<compile_context>
chip_gen: v6e
topology: v6e:2x2x1
jax: 0.10.0
libtpu: 0.0.40
codegen_flags: <defaults>
</compile_context>

<pallas_src>
import functools

import jax
import jax.numpy as jnp
from jax.experimental import pallas as pl
from jax.experimental.pallas import tpu as pltpu

# Fixed DeepSpeech2Extractor hyper-parameters.
IN_CHANNELS = 1
OUT_CHANNELS = 32
KH1, KW1, SD1, ST1, PD1, PT1 = 41, 11, 2, 2, 20, 5   # conv1: (freq, time)
KH2, KW2, SD2, ST2, PD2, PT2 = 21, 11, 2, 1, 10, 5   # conv2: (freq, time)
BN_EPS = 1e-5
HT_MIN, HT_MAX = 0.0, 20.0                           # Hardtanh(0, 20)


# ----------------------------- fused Pallas kernel -----------------------------

def _ds2_kernel(p1_ref, w1_ref, b1_ref, m1_ref, w2_ref, b2_ref, m2_ref, o_ref,
                *, B, To1, Do1, To2, Do2, C):
    K1 = w1_ref.shape[0]
    F = Do1 * C

    # ---- conv1 as one im2col matmul (MXU, contraction=451) + folded BN1 + Hardtanh
    #      + MaskCNN time mask (rows ordered (b, t, d_freq)) ----
    p1 = p1_ref[...].reshape(B * To1 * Do1, K1)
    h1 = jnp.dot(p1, w1_ref[...], preferred_element_type=jnp.float32) + b1_ref[...]
    h1 = jnp.clip(h1, HT_MIN, HT_MAX) * m1_ref[...]             # (B*To1*Do1, C)

    # ---- zero-pad time for conv2 (major-dim concat), flatten (freq, cin) onto lanes ----
    h1 = h1.reshape(B, To1, Do1, C)
    zt = jnp.zeros((B, PT2, Do1, C), jnp.float32)
    h1p = jnp.concatenate([zt, h1, zt], axis=1).reshape(B, To1 + 2 * PT2, F)

    # ---- conv2 + folded BN2 as ONE lane-dense matmul:
    #      contraction = KW2*Do1*C, output = C*Do2 (freq padding folded into the
    #      block-Toeplitz weight built in the wrapper) ----
    xs = jnp.concatenate([h1p[:, kw:kw + To2, :] for kw in range(KW2)], axis=2)
    xs = xs.reshape(B * To2, KW2 * F)
    h2 = jnp.dot(xs, w2_ref[...], preferred_element_type=jnp.float32) + b2_ref[...]
    h2 = jnp.clip(h2, HT_MIN, HT_MAX) * m2_ref[...]             # (B*To2, C*Do2)

    # Columns are already ordered c*Do2 + d == permute(0,3,1,2).view(B,T,C*D).
    o_ref[...] = h2.reshape(B, To2, C * Do2)


# ----------------------------- wrapper -----------------------------

def deepspeech2_extractor_forward(params, inputs, input_lengths):
    """inputs: (B, T, D) f32; input_lengths: (B,) int32 -> (outputs, output_lengths)."""
    B, T, D = inputs.shape
    C = OUT_CHANNELS

    # PyTorch: inputs.unsqueeze(1).transpose(2, 3) -> (B, 1, D, T); Cin == 1.
    x = jnp.transpose(inputs, (0, 2, 1))                        # (B, D_freq, T_time)

    Do1 = (D + 2 * PD1 - KH1) // SD1 + 1
    To1 = (T + 2 * PT1 - KW1) // ST1 + 1
    Do2 = (Do1 + 2 * PD2 - KH2) // SD2 + 1
    To2 = (To1 + 2 * PT2 - KW2) // ST2 + 1                      # == To1

    # conv1 im2col patches (pure data rearrangement): p1[b, t, d, kh*KW1 + kw]
    xpad = jnp.pad(x, ((0, 0), (PD1, PD1), (PT1, PT1)))
    d_idx = SD1 * jnp.arange(Do1)[:, None] + jnp.arange(KH1)[None, :]   # (Do1, KH1)
    t_idx = ST1 * jnp.arange(To1)[:, None] + jnp.arange(KW1)[None, :]   # (To1, KW1)
    xw = jnp.take(xpad, d_idx, axis=1)                          # (B, Do1, KH1, Tp1)
    p5 = jnp.take(xw, t_idx, axis=3)                            # (B, Do1, KH1, To1, KW1)
    p1 = jnp.transpose(p5, (0, 3, 1, 2, 4)).reshape(B, To1, Do1, KH1 * KW1)

    # Fold eval-mode BatchNorm1 into the (bias-free) conv1 weights and a bias.
    s1 = params["bn1_gamma"] / jnp.sqrt(params["bn1_var"] + BN_EPS)
    w1f = params["conv1_w"].reshape(C, KH1 * KW1).T * s1[None, :]        # (451, C)
    b1f = (params["bn1_beta"] - params["bn1_mean"] * s1).reshape(1, C)

    # conv2 + BN2 as a block-Toeplitz weight over (kw, freq, cin) -> (c, d_out):
    #   W[kw, f*C+ci, c*Do2+d] = conv2_w[c, ci, f - 2d + PD2, kw] * s2[c]  (0 if kh oob)
    s2 = params["bn2_gamma"] / jnp.sqrt(params["bn2_var"] + BN_EPS)
    kh = jnp.arange(Do1)[:, None] - SD2 * jnp.arange(Do2)[None, :] + PD2  # (Do1, Do2)
    valid = ((kh >= 0) & (kh < KH2)).astype(jnp.float32)
    khc = jnp.clip(kh, 0, KH2 - 1)
    w2s = params["conv2_w"] * s2[:, None, None, None]            # (c, ci, kh, kw)
    w2t = jnp.transpose(w2s, (3, 2, 1, 0))                       # (kw, kh, ci, c)
    wg = w2t[:, khc, :, :] * valid[None, :, :, None, None]       # (kw, f, d, ci, c)
    w2f = jnp.transpose(wg, (0, 1, 3, 4, 2)).reshape(KW2 * Do1 * C, C * Do2)
    b2f = jnp.repeat(params["bn2_beta"] - params["bn2_mean"] * s2, Do2).reshape(1, C * Do2)

    # MaskCNN length recurrence: conv1 halves (floor((L-1)/2)+1); conv2/BN/Hardtanh keep it.
    output_lengths = (input_lengths.astype(jnp.int32) - 1) // 2 + 1
    tmask = (jnp.arange(To2)[None, :] < output_lengths[:, None]).astype(jnp.float32)
    m1 = jnp.repeat(tmask.reshape(B * To1), Do1).reshape(B * To1 * Do1, 1)
    m2 = tmask.reshape(B * To2, 1)

    kernel = functools.partial(_ds2_kernel, B=B, To1=To1, Do1=Do1, To2=To2, Do2=Do2, C=C)
    vmem = pl.BlockSpec(memory_space=pltpu.MemorySpace.VMEM)
    out = pl.pallas_call(
        kernel,
        out_shape=jax.ShapeDtypeStruct((B, To2, C * Do2), jnp.float32),
        in_specs=[vmem] * 7,
        out_specs=vmem,
    )(p1, w1f, b1f, m1, w2f, b2f, m2)
    return out, output_lengths


# ----------------------------- pure-JAX reference -----------------------------

def _reference_forward(x, lengths, params):
    """Faithful eval-mode port of DeepSpeech2Extractor.forward (XLA convs)."""
    dn = ("NCHW", "OIHW", "NCHW")
    hp = jax.lax.Precision.HIGHEST
    h = jnp.transpose(x, (0, 2, 1))[:, None, :, :]              # (B, 1, D, T)
    lens_t = lengths.astype(jnp.int32)

    def block(h, lens_t, w, stride, pad, g, b, m, v):
        out = jax.lax.conv_general_dilated(h, w, stride, pad,
                                           dimension_numbers=dn, precision=hp)
        num = lens_t + 2 * pad[1][0] - (w.shape[-1] - 1) - 1
        lens_t = num // stride[1] + 1
        t = out.shape[-1]
        mask = (jnp.arange(t)[None, :] < lens_t[:, None])[:, None, None, :]
        out = jnp.where(mask, out, 0.0)                         # mask after conv
        scale = g / jnp.sqrt(v + BN_EPS)
        shift = b - m * scale
        out = out * scale[None, :, None, None] + shift[None, :, None, None]
        out = jnp.where(mask, out, 0.0)                         # mask after BN
        out = jnp.clip(out, HT_MIN, HT_MAX)
        out = jnp.where(mask, out, 0.0)                         # mask after Hardtanh
        return out, lens_t

    h, lens_t = block(h, lens_t, params["conv1_w"], (SD1, ST1),
                      ((PD1, PD1), (PT1, PT1)), params["bn1_gamma"],
                      params["bn1_beta"], params["bn1_mean"], params["bn1_var"])
    h, lens_t = block(h, lens_t, params["conv2_w"], (SD2, ST2),
                      ((PD2, PD2), (PT2, PT2)), params["bn2_gamma"],
                      params["bn2_beta"], params["bn2_mean"], params["bn2_var"])
    Bo, Co, Do, To = h.shape
    out = jnp.transpose(h, (0, 3, 1, 2)).reshape(Bo, To, Co * Do)
    return out, lens_t


# ----------------------------- main -----------------------------

if __name__ == "__main__":
    B, T, D = 2, 16, 16
    C = OUT_CHANNELS

    key = jax.random.PRNGKey(0)
    ks = jax.random.split(key, 12)
    params = {
        "conv1_w": 0.05 * jax.random.normal(ks[0], (C, IN_CHANNELS, KH1, KW1), jnp.float32),
        "bn1_gamma": 1.0 + 0.1 * jax.random.normal(ks[1], (C,), jnp.float32),
        "bn1_beta": 0.1 * jax.random.normal(ks[2], (C,), jnp.float32),
        "bn1_mean": 0.1 * jax.random.normal(ks[3], (C,), jnp.float32),
        "bn1_var": jax.random.uniform(ks[4], (C,), jnp.float32, 0.5, 1.5),
        "conv2_w": 0.02 * jax.random.normal(ks[5], (C, C, KH2, KW2), jnp.float32),
        "bn2_gamma": 1.0 + 0.1 * jax.random.normal(ks[6], (C,), jnp.float32),
        "bn2_beta": 0.1 * jax.random.normal(ks[7], (C,), jnp.float32),
        "bn2_mean": 0.1 * jax.random.normal(ks[8], (C,), jnp.float32),
        "bn2_var": jax.random.uniform(ks[9], (C,), jnp.float32, 0.5, 1.5),
    }
    inputs = jax.random.normal(ks[10], (B, T, D), jnp.float32)
    input_lengths = jnp.array([16, 13], jnp.int32)

    fwd = jax.jit(deepspeech2_extractor_forward)
    out, out_lens = fwd(params, inputs, input_lengths)
    out = jax.block_until_ready(out)
    out_lens = jax.block_until_ready(out_lens)

    ref_out, ref_lens = _reference_forward(inputs, input_lengths, params)

    assert out.shape == (B, 8, 128), out.shape
    assert bool(jnp.all(out_lens == ref_lens))
    assert bool(jnp.all(jnp.isfinite(out)))
    # MaskCNN: time steps beyond the per-sample output length must be exactly zero.
    assert bool(jnp.all(out[1, 7:, :] == 0.0))
    max_err = float(jnp.max(jnp.abs(out - ref_out)))
    assert max_err < 2e-2, max_err

    print("KERNEL_OK")
</pallas_src>

<mosaic_0001>
module attributes {stable_mosaic.version = 11 : i64} {
  func.func @_ds2_kernel(%arg0: memref<2x8x8x451xf32, #tpu.memory_space<vmem>>, %arg1: memref<451x32xf32, #tpu.memory_space<vmem>>, %arg2: memref<1x32xf32, #tpu.memory_space<vmem>>, %arg3: memref<128x1xf32, #tpu.memory_space<vmem>>, %arg4: memref<2816x128xf32, #tpu.memory_space<vmem>>, %arg5: memref<1x128xf32, #tpu.memory_space<vmem>>, %arg6: memref<16x1xf32, #tpu.memory_space<vmem>>, %arg7: memref<2x8x128xf32, #tpu.memory_space<vmem>>) attributes {dimension_semantics = [], scalar_prefetch = 0 : i64, scratch_operands = 0 : i64, tpu.core_type = #tpu.core_type<tc>} {
    %c0 = arith.constant 0 : index
    %c0_0 = arith.constant 0 : index
    %c0_1 = arith.constant 0 : index
    %c0_2 = arith.constant 0 : index
    %0 = vector.load %arg0[%c0, %c0_0, %c0_1, %c0_2] : memref<2x8x8x451xf32, #tpu.memory_space<vmem>>, vector<2x8x8x451xf32>
    %1 = vector.shape_cast %0 : vector<2x8x8x451xf32> to vector<128x451xf32>
    %c0_3 = arith.constant 0 : index
    %c0_4 = arith.constant 0 : index
    %2 = vector.load %arg1[%c0_3, %c0_4] : memref<451x32xf32, #tpu.memory_space<vmem>>, vector<451x32xf32>
    %cst = arith.constant dense<0.000000e+00> : vector<128x32xf32>
    %3 = tpu.matmul %1, %2, %cst {dimension_numbers = #tpu.dot_dimension_numbers<[1], [0], [0], [1], [0, 0, 1, 1], [], []>} : vector<128x451xf32>, vector<451x32xf32>, vector<128x32xf32> -> vector<128x32xf32>
    %c0_5 = arith.constant 0 : index
    %c0_6 = arith.constant 0 : index
    %4 = vector.load %arg2[%c0_5, %c0_6] : memref<1x32xf32, #tpu.memory_space<vmem>>, vector<1x32xf32>
    %5 = vector.broadcast %4 : vector<1x32xf32> to vector<128x32xf32>
    %6 = arith.addf %3, %5 : vector<128x32xf32>
    %cst_7 = arith.constant 0.000000e+00 : f32
    %cst_8 = arith.constant 2.000000e+01 : f32
    %7 = vector.broadcast %cst_7 : f32 to vector<128x32xf32>
    %8 = arith.maximumf %7, %6 : vector<128x32xf32>
    %9 = vector.broadcast %cst_8 : f32 to vector<128x32xf32>
    %10 = arith.minimumf %9, %8 : vector<128x32xf32>
    %c0_9 = arith.constant 0 : index
    %c0_10 = arith.constant 0 : index
    %11 = vector.load %arg3[%c0_9, %c0_10] : memref<128x1xf32, #tpu.memory_space<vmem>>, vector<128x1xf32>
    %12 = vector.broadcast %11 : vector<128x1xf32> to vector<128x32xf32>
    %13 = arith.mulf %10, %12 : vector<128x32xf32>
    %14 = vector.shape_cast %13 : vector<128x32xf32> to vector<2x8x8x32xf32>
    %cst_11 = arith.constant 0.000000e+00 : f32
    %15 = vector.broadcast %cst_11 : f32 to vector<2x5x8x32xf32>
    %16 = tpu.concatenate %15, %14, %15 in 1 : vector<2x5x8x32xf32>, vector<2x8x8x32xf32>, vector<2x5x8x32xf32> -> vector<2x18x8x32xf32>
    %17 = vector.shape_cast %16 : vector<2x18x8x32xf32> to vector<2x18x256xf32>
    %18 = vector.extract_strided_slice %17 {offsets = [0, 0, 0], sizes = [2, 8, 256], strides = [1, 1, 1]} : vector<2x18x256xf32> to vector<2x8x256xf32>
    %19 = vector.extract_strided_slice %17 {offsets = [0, 1, 0], sizes = [2, 8, 256], strides = [1, 1, 1]} : vector<2x18x256xf32> to vector<2x8x256xf32>
    %20 = vector.extract_strided_slice %17 {offsets = [0, 2, 0], sizes = [2, 8, 256], strides = [1, 1, 1]} : vector<2x18x256xf32> to vector<2x8x256xf32>
    %21 = vector.extract_strided_slice %17 {offsets = [0, 3, 0], sizes = [2, 8, 256], strides = [1, 1, 1]} : vector<2x18x256xf32> to vector<2x8x256xf32>
    %22 = vector.extract_strided_slice %17 {offsets = [0, 4, 0], sizes = [2, 8, 256], strides = [1, 1, 1]} : vector<2x18x256xf32> to vector<2x8x256xf32>
    %23 = vector.extract_strided_slice %17 {offsets = [0, 5, 0], sizes = [2, 8, 256], strides = [1, 1, 1]} : vector<2x18x256xf32> to vector<2x8x256xf32>
    %24 = vector.extract_strided_slice %17 {offsets = [0, 6, 0], sizes = [2, 8, 256], strides = [1, 1, 1]} : vector<2x18x256xf32> to vector<2x8x256xf32>
    %25 = vector.extract_strided_slice %17 {offsets = [0, 7, 0], sizes = [2, 8, 256], strides = [1, 1, 1]} : vector<2x18x256xf32> to vector<2x8x256xf32>
    %26 = vector.extract_strided_slice %17 {offsets = [0, 8, 0], sizes = [2, 8, 256], strides = [1, 1, 1]} : vector<2x18x256xf32> to vector<2x8x256xf32>
    %27 = vector.extract_strided_slice %17 {offsets = [0, 9, 0], sizes = [2, 8, 256], strides = [1, 1, 1]} : vector<2x18x256xf32> to vector<2x8x256xf32>
    %28 = vector.extract_strided_slice %17 {offsets = [0, 10, 0], sizes = [2, 8, 256], strides = [1, 1, 1]} : vector<2x18x256xf32> to vector<2x8x256xf32>
    %29 = tpu.concatenate %18, %19, %20, %21, %22, %23, %24, %25, %26, %27, %28 in 2 : vector<2x8x256xf32>, vector<2x8x256xf32>, vector<2x8x256xf32>, vector<2x8x256xf32>, vector<2x8x256xf32>, vector<2x8x256xf32>, vector<2x8x256xf32>, vector<2x8x256xf32>, vector<2x8x256xf32>, vector<2x8x256xf32>, vector<2x8x256xf32> -> vector<2x8x2816xf32>
    %30 = vector.shape_cast %29 : vector<2x8x2816xf32> to vector<16x2816xf32>
    %c0_12 = arith.constant 0 : index
    %c0_13 = arith.constant 0 : index
    %31 = vector.load %arg4[%c0_12, %c0_13] : memref<2816x128xf32, #tpu.memory_space<vmem>>, vector<2816x128xf32>
    %cst_14 = arith.constant dense<0.000000e+00> : vector<16x128xf32>
    %32 = tpu.matmul %30, %31, %cst_14 {dimension_numbers = #tpu.dot_dimension_numbers<[1], [0], [0], [1], [0, 0, 1, 1], [], []>} : vector<16x2816xf32>, vector<2816x128xf32>, vector<16x128xf32> -> vector<16x128xf32>
    %c0_15 = arith.constant 0 : index
    %c0_16 = arith.constant 0 : index
    %33 = vector.load %arg5[%c0_15, %c0_16] : memref<1x128xf32, #tpu.memory_space<vmem>>, vector<1x128xf32>
    %34 = vector.broadcast %33 : vector<1x128xf32> to vector<16x128xf32>
    %35 = arith.addf %32, %34 : vector<16x128xf32>
    %cst_17 = arith.constant 0.000000e+00 : f32
    %cst_18 = arith.constant 2.000000e+01 : f32
    %36 = vector.broadcast %cst_17 : f32 to vector<16x128xf32>
    %37 = arith.maximumf %36, %35 : vector<16x128xf32>
    %38 = vector.broadcast %cst_18 : f32 to vector<16x128xf32>
    %39 = arith.minimumf %38, %37 : vector<16x128xf32>
    %c0_19 = arith.constant 0 : index
    %c0_20 = arith.constant 0 : index
    %40 = vector.load %arg6[%c0_19, %c0_20] : memref<16x1xf32, #tpu.memory_space<vmem>>, vector<16x1xf32>
    %41 = vector.broadcast %40 : vector<16x1xf32> to vector<16x128xf32>
    %42 = arith.mulf %39, %41 : vector<16x128xf32>
    %43 = vector.shape_cast %42 : vector<16x128xf32> to vector<2x8x128xf32>
    %c0_21 = arith.constant 0 : index
    %c0_22 = arith.constant 0 : index
    %c0_23 = arith.constant 0 : index
    %44 = vector.load %arg7[%c0_21, %c0_22, %c0_23] : memref<2x8x128xf32, #tpu.memory_space<vmem>>, vector<2x8x128xf32>
    tpu.vector_store %arg7[%c0_21, %c0_22, %c0_23], %43 {strides = array<i32>} : memref<2x8x128xf32, #tpu.memory_space<vmem>>, vector<2x8x128xf32>,
    return
  }
}

</mosaic_0001>

<llo_original>
// kernel: deepspeech2_extractor_forward.1
$region0: #{deepspeech2_extractor_forward.1}
  #allocation0 [shape = 'u32[]', space=smem, size = 0x4, offset = 0x4, fixed_abs, tag = 'smem constant byte address 0x4 - core index']
  #allocation1 [shape = 'u32[144,128]{1,0:T(1,128)}', space=vmem, size = 0x12000, scoped, tag = 'internal scratch']
  %s0 = inlined_call_operand.vmem [shape: f32[2,8,8,451], index: 0, kind: input, shape index: {}]
  %s1 = inlined_call_operand.vmem [shape: f32[451,32], index: 1, kind: input, shape index: {}]
  %s2 = inlined_call_operand.vmem [shape: f32[1,32], index: 2, kind: input, shape index: {}]
  %s3 = inlined_call_operand.vmem [shape: f32[128,1], index: 3, kind: input, shape index: {}]
  %s4 = inlined_call_operand.vmem [shape: f32[2816,128], index: 4, kind: input, shape index: {}]
  %s5 = inlined_call_operand.vmem [shape: f32[1,128], index: 5, kind: input, shape index: {}]
  %s6 = inlined_call_operand.vmem [shape: f32[16,1], index: 6, kind: input, shape index: {}]
  %s7 = inlined_call_operand.hbm [shape: f32[2,8,128], index: 7, kind: output, shape index: {}]
  %s8 = sld [smem:[#allocation0]]
  $region38: #{deepspeech2_extractor_forward.1} parent=0
    _
  %s10 = ssub.s32 1, %s8
  %s11 = scalar_select 0, %s10, %s8
  $region1: #{deepspeech2_extractor_forward.1} parent=0
    #allocation2 [shape = 'u8[8192]{0}', space=vmem, size = 0x2000, scoped, tag = 'output window, operand 0, single buffered']
    #allocation3 [shape = 's32[1]{0}', space=sflag, size = 0x4, scoped, tag = 'scoped memory for deepspeech2_extractor_forward.1']
    %12 = vsyncpa [#allocation3], 0
    // Predicated region
    $region2: #{deepspeech2_extractor_forward.1} parent=1 // pred_check
      _
    $region3: #{deepspeech2_extractor_forward.1} parent=1 // pred_check_branch
      %14 = sbr.rel (0) target = $region5
    $region4: #{deepspeech2_extractor_forward.1} parent=1 // pred_region
      _
    $region5: #{deepspeech2_extractor_forward.1} parent=1 // pred_fallthru
      _
    // Predicated region
    $region6: #{deepspeech2_extractor_forward.1} parent=1 // pred_check
      _
    $region7: #{deepspeech2_extractor_forward.1} parent=1 // pred_check_branch
      %16 = sbr.rel (0) target = $region9
    $region8: #{deepspeech2_extractor_forward.1} parent=1 // pred_region
      _
    $region9: #{deepspeech2_extractor_forward.1} parent=1 // pred_fallthru
      _
    // Predicated region
    $region10: #{deepspeech2_extractor_forward.1} parent=1 // pred_check
      _
    $region11: #{deepspeech2_extractor_forward.1} parent=1 // pred_check_branch
      %18 = sbr.rel (0) target = $region13
    $region12: #{deepspeech2_extractor_forward.1} parent=1 // pred_region
      _
    $region13: #{deepspeech2_extractor_forward.1} parent=1 // pred_fallthru
      _
    // Predicated region
    $region14: #{deepspeech2_extractor_forward.1} parent=1 // pred_check
      _
    $region15: #{deepspeech2_extractor_forward.1} parent=1 // pred_check_branch
      %20 = sbr.rel (0) target = $region17
    $region16: #{deepspeech2_extractor_forward.1} parent=1 // pred_region
      _
    $region17: #{deepspeech2_extractor_forward.1} parent=1 // pred_fallthru
      _
    // Predicated region
    $region18: #{deepspeech2_extractor_forward.1} parent=1 // pred_check
      _
    $region19: #{deepspeech2_extractor_forward.1} parent=1 // pred_check_branch
      %22 = sbr.rel (0) target = $region21
    $region20: #{deepspeech2_extractor_forward.1} parent=1 // pred_region
      _
    $region21: #{deepspeech2_extractor_forward.1} parent=1 // pred_fallthru
      _
    // Predicated region
    $region22: #{deepspeech2_extractor_forward.1} parent=1 // pred_check
      _
    $region23: #{deepspeech2_extractor_forward.1} parent=1 // pred_check_branch
      %24 = sbr.rel (0) target = $region25
    $region24: #{deepspeech2_extractor_forward.1} parent=1 // pred_region
      _
    $region25: #{deepspeech2_extractor_forward.1} parent=1 // pred_fallthru
      _
    // Predicated region
    $region26: #{deepspeech2_extractor_forward.1} parent=1 // pred_check
      _
    $region27: #{deepspeech2_extractor_forward.1} parent=1 // pred_check_branch
      %26 = sbr.rel (0) target = $region29
    $region28: #{deepspeech2_extractor_forward.1} parent=1 // pred_region
      _
    $region29: #{deepspeech2_extractor_forward.1} parent=1 // pred_fallthru
      _
    %v27 = vld [vmem:[%s0] sm:$0xff]
    %v28 = vld [vmem:[%s0 + $0x8] sm:$0xff]
    %v29 = vld [vmem:[%s0 + $0x10] sm:$0xff]
    %v30 = vld [vmem:[%s0 + $0x18] sm:$0xff]
    %v31 = vld [vmem:[%s0 + $0x20] sm:$0xff]
    %v32 = vld [vmem:[%s0 + $0x28] sm:$0xff]
    %v33 = vld [vmem:[%s0 + $0x30] sm:$0xff]
    %v34 = vld [vmem:[%s0 + $0x38] sm:$0xff]
    %v35 = vld [vmem:[%s0 + $0x40] sm:$0xff]
    %v36 = vld [vmem:[%s0 + $0x48] sm:$0xff]
    %v37 = vld [vmem:[%s0 + $0x50] sm:$0xff]
    %v38 = vld [vmem:[%s0 + $0x58] sm:$0xff]
    %v39 = vld [vmem:[%s0 + $0x60] sm:$0xff]
    %v40 = vld [vmem:[%s0 + $0x68] sm:$0xff]
    %v41 = vld [vmem:[%s0 + $0x70] sm:$0xff]
    %v42 = vld [vmem:[%s0 + $0x78] sm:$0xff]
    %v43 = vld [vmem:[%s0 + $0x80] sm:$0xff]
    %v44 = vld [vmem:[%s0 + $0x88] sm:$0xff]
    %v45 = vld [vmem:[%s0 + $0x90] sm:$0xff]
    %v46 = vld [vmem:[%s0 + $0x98] sm:$0xff]
    %v47 = vld [vmem:[%s0 + $0xa0] sm:$0xff]
    %v48 = vld [vmem:[%s0 + $0xa8] sm:$0xff]
    %v49 = vld [vmem:[%s0 + $0xb0] sm:$0xff]
    %v50 = vld [vmem:[%s0 + $0xb8] sm:$0xff]
    %v51 = vld [vmem:[%s0 + $0xc0] sm:$0xff]
    %v52 = vld [vmem:[%s0 + $0xc8] sm:$0xff]
    %v53 = vld [vmem:[%s0 + $0xd0] sm:$0xff]
    %v54 = vld [vmem:[%s0 + $0xd8] sm:$0xff]
    %v55 = vld [vmem:[%s0 + $0xe0] sm:$0xff]
    %v56 = vld [vmem:[%s0 + $0xe8] sm:$0xff]
    %v57 = vld [vmem:[%s0 + $0xf0] sm:$0xff]
    %v58 = vld [vmem:[%s0 + $0xf8] sm:$0xff]
    %v59 = vld [vmem:[%s0 + $0x100] sm:$0xff]
    %v60 = vld [vmem:[%s0 + $0x108] sm:$0xff]
    %v61 = vld [vmem:[%s0 + $0x110] sm:$0xff]
    %v62 = vld [vmem:[%s0 + $0x118] sm:$0xff]
    %v63 = vld [vmem:[%s0 + $0x120] sm:$0xff]
    %v64 = vld [vmem:[%s0 + $0x128] sm:$0xff]
    %v65 = vld [vmem:[%s0 + $0x130] sm:$0xff]
    %v66 = vld [vmem:[%s0 + $0x138] sm:$0xff]
    %v67 = vld [vmem:[%s0 + $0x140] sm:$0xff]
    %v68 = vld [vmem:[%s0 + $0x148] sm:$0xff]
    %v69 = vld [vmem:[%s0 + $0x150] sm:$0xff]
    %v70 = vld [vmem:[%s0 + $0x158] sm:$0xff]
    %v71 = vld [vmem:[%s0 + $0x160] sm:$0xff]
    %v72 = vld [vmem:[%s0 + $0x168] sm:$0xff]
    %v73 = vld [vmem:[%s0 + $0x170] sm:$0xff]
    %v74 = vld [vmem:[%s0 + $0x178] sm:$0xff]
    %v75 = vld [vmem:[%s0 + $0x180] sm:$0xff]
    %v76 = vld [vmem:[%s0 + $0x188] sm:$0xff]
    %v77 = vld [vmem:[%s0 + $0x190] sm:$0xff]
    %v78 = vld [vmem:[%s0 + $0x198] sm:$0xff]
    %v79 = vld [vmem:[%s0 + $0x1a0] sm:$0xff]
    %v80 = vld [vmem:[%s0 + $0x1a8] sm:$0xff]
    %v81 = vld [vmem:[%s0 + $0x1b0] sm:$0xff]
    %v82 = vld [vmem:[%s0 + $0x1b8] sm:$0xff]
    %v83 = vld [vmem:[%s0 + $0x1c0] sm:$0xff]
    %v84 = vld [vmem:[%s0 + $0x1c8] sm:$0xff]
    %v85 = vld [vmem:[%s0 + $0x1d0] sm:$0xff]
    %v86 = vld [vmem:[%s0 + $0x1d8] sm:$0xff]
    %v87 = vld [vmem:[%s0 + $0x1e0] sm:$0xff]
    %v88 = vld [vmem:[%s0 + $0x1e8] sm:$0xff]
    %v89 = vld [vmem:[%s0 + $0x1f0] sm:$0xff]
    %v90 = vld [vmem:[%s0 + $0x1f8] sm:$0xff]
    %v91 = vld [vmem:[%s1] sm:$0xff]
    %v92 = vld [vmem:[%s1 + $0x8] sm:$0xff]
    %v93 = vld [vmem:[%s1 + $0x10] sm:$0xff]
    %v94 = vld [vmem:[%s1 + $0x18] sm:$0xff]
    %v95 = vld [vmem:[%s1 + $0x20] sm:$0xff]
    %v96 = vld [vmem:[%s1 + $0x28] sm:$0xff]
    %v97 = vld [vmem:[%s1 + $0x30] sm:$0xff]
    %v98 = vld [vmem:[%s1 + $0x38] sm:$0xff]
    %v99 = vld [vmem:[%s1 + $0x40] sm:$0xff]
    %v100 = vld [vmem:[%s1 + $0x48] sm:$0xff]
    %v101 = vld [vmem:[%s1 + $0x50] sm:$0xff]
    %v102 = vld [vmem:[%s1 + $0x58] sm:$0xff]
    %v103 = vld [vmem:[%s1 + $0x60] sm:$0xff]
    %v104 = vld [vmem:[%s1 + $0x68] sm:$0xff]
    %v105 = vld [vmem:[%s1 + $0x70] sm:$0xff]
    %v106 = vld [vmem:[%s1 + $0x78] sm:$0xff]
    %v107 = vld [vmem:[%s1 + $0x80] sm:$0xff]
    %v108 = vld [vmem:[%s1 + $0x88] sm:$0xff]
    %v109 = vld [vmem:[%s1 + $0x90] sm:$0xff]
    %v110 = vld [vmem:[%s1 + $0x98] sm:$0xff]
    %v111 = vld [vmem:[%s1 + $0xa0] sm:$0xff]
    %v112 = vld [vmem:[%s1 + $0xa8] sm:$0xff]
    %v113 = vld [vmem:[%s1 + $0xb0] sm:$0xff]
    %v114 = vld [vmem:[%s1 + $0xb8] sm:$0xff]
    %v115 = vld [vmem:[%s1 + $0xc0] sm:$0xff]
    %v116 = vld [vmem:[%s1 + $0xc8] sm:$0xff]
    %v117 = vld [vmem:[%s1 + $0xd0] sm:$0xff]
    %v118 = vld [vmem:[%s1 + $0xd8] sm:$0xff]
    %v119 = vld [vmem:[%s1 + $0xe0] sm:$0xff]
    %v120 = vld [vmem:[%s1 + $0xe8] sm:$0xff]
    %v121 = vld [vmem:[%s1 + $0xf0] sm:$0xff]
    %v122 = vld [vmem:[%s1 + $0xf8] sm:$0xff]
    %v123 = vld [vmem:[%s1 + $0x100] sm:$0xff]
    %v124 = vld [vmem:[%s1 + $0x108] sm:$0xff]
    %v125 = vld [vmem:[%s1 + $0x110] sm:$0xff]
    %v126 = vld [vmem:[%s1 + $0x118] sm:$0xff]
    %v127 = vld [vmem:[%s1 + $0x120] sm:$0xff]
    %v128 = vld [vmem:[%s1 + $0x128] sm:$0xff]
    %v129 = vld [vmem:[%s1 + $0x130] sm:$0xff]
    %v130 = vld [vmem:[%s1 + $0x138] sm:$0xff]
    %v131 = vld [vmem:[%s1 + $0x140] sm:$0xff]
    %v132 = vld [vmem:[%s1 + $0x148] sm:$0xff]
    %v133 = vld [vmem:[%s1 + $0x150] sm:$0xff]
    %v134 = vld [vmem:[%s1 + $0x158] sm:$0xff]
    %v135 = vld [vmem:[%s1 + $0x160] sm:$0xff]
    %v136 = vld [vmem:[%s1 + $0x168] sm:$0xff]
    %v137 = vld [vmem:[%s1 + $0x170] sm:$0xff]
    %v138 = vld [vmem:[%s1 + $0x178] sm:$0xff]
    %v139 = vld [vmem:[%s1 + $0x180] sm:$0xff]
    %v140 = vld [vmem:[%s1 + $0x188] sm:$0xff]
    %v141 = vld [vmem:[%s1 + $0x190] sm:$0xff]
    %v142 = vld [vmem:[%s1 + $0x198] sm:$0xff]
    %v143 = vld [vmem:[%s1 + $0x1a0] sm:$0xff]
    %v144 = vld [vmem:[%s1 + $0x1a8] sm:$0xff]
    %v145 = vld [vmem:[%s1 + $0x1b0] sm:$0xff]
    %v146 = vld [vmem:[%s1 + $0x1b8] sm:$0xff]
    %v147 = vld [vmem:[%s1 + $0x1c0] sm:$0x7]
    %v148 = vld [vmem:[%s2] sm:$0x1]
    %v150 = vlaneseq
    %v151 = vshrl.u32 %v150, 7
    %v152 = vsub.s32 0, %v151
    %v153 = vrot.slane %v148, %v152
    %vm155 = vcmask 547840
    %v157 = vsel %vm155, %v30, 0
    %v160 = vsel %vm155, %v34, 0
    %v163 = vsel %vm155, %v38, 0
    %v166 = vsel %vm155, %v42, 0
    %v169 = vsel %vm155, %v46, 0
    %v172 = vsel %vm155, %v50, 0
    %v175 = vsel %vm155, %v54, 0
    %v178 = vsel %vm155, %v58, 0
    %v181 = vsel %vm155, %v62, 0
    %v184 = vsel %vm155, %v66, 0
    %v187 = vsel %vm155, %v70, 0
    %v190 = vsel %vm155, %v74, 0
    %v193 = vsel %vm155, %v78, 0
    %v196 = vsel %vm155, %v82, 0
    %v199 = vsel %vm155, %v86, 0
    %v202 = vsel %vm155, %v90, 0
    %vm204 = vcmask 1042432
    %v206 = vsel %vm204, %v147, 0
    %208 = vmatprep.subr.mxu0 0.0
    %209 = vmatpush1.msra.mxu0 %v106
    %210 = vmatprep.subr.mxu0 0.0
    %211 = vmatpush1.msra.mxu0 %v105
    %212 = vmatprep.subr.mxu0 0.0
    %213 = vmatpush1.msra.mxu0 %v104
    %214 = vmatprep.subr.mxu0 0.0
    %215 = vmatpush1.msra.mxu0 %v103
    %216 = vmatprep.subr.mxu0 0.0
    %217 = vmatpush1.msra.mxu0 %v102
    %218 = vmatprep.subr.mxu0 0.0
    %219 = vmatpush1.msra.mxu0 %v101
    %220 = vmatprep.subr.mxu0 0.0
    %221 = vmatpush1.msra.mxu0 %v100
    %222 = vmatprep.subr.mxu0 0.0
    %223 = vmatpush1.msra.mxu0 %v99
    %224 = vmatprep.subr.mxu0 0.0
    %225 = vmatpush1.msra.mxu0 %v98
    %226 = vmatprep.subr.mxu0 0.0
    %227 = vmatpush1.msra.mxu0 %v97
    %228 = vmatprep.subr.mxu0 0.0
    %229 = vmatpush1.msra.mxu0 %v96
    %230 = vmatprep.subr.mxu0 0.0
    %231 = vmatpush1.msra.mxu0 %v95
    %232 = vmatprep.subr.mxu0 0.0
    %233 = vmatpush1.msra.mxu0 %v94
    %234 = vmatprep.subr.mxu0 0.0
    %235 = vmatpush1.msra.mxu0 %v93
    %236 = vmatprep.subr.mxu0 0.0
    %237 = vmatpush1.msra.mxu0 %v92
    %238 = vmatprep.subr.mxu0 0.0
    %239 = vmatpush1.msra.mxu0 %v91
    %240 = vmatprep.subr.mxu0 0.0
    %241 = vmatpush2.msra.mxu0 %v122
    %242 = vmatprep.subr.mxu0 0.0
    %243 = vmatpush2.msra.mxu0 %v121
    %244 = vmatprep.subr.mxu0 0.0
    %245 = vmatpush2.msra.mxu0 %v120
    %246 = vmatprep.subr.mxu0 0.0
    %247 = vmatpush2.msra.mxu0 %v119
    %248 = vmatprep.subr.mxu0 0.0
    %249 = vmatpush2.msra.mxu0 %v118
    %250 = vmatprep.subr.mxu0 0.0
    %251 = vmatpush2.msra.mxu0 %v117
    %252 = vmatprep.subr.mxu0 0.0
    %253 = vmatpush2.msra.mxu0 %v116
    %254 = vmatprep.subr.mxu0 0.0
    %255 = vmatpush2.msra.mxu0 %v115
    %256 = vmatprep.subr.mxu0 0.0
    %257 = vmatpush2.msra.mxu0 %v114
    %258 = vmatprep.subr.mxu0 0.0
    %259 = vmatpush2.msra.mxu0 %v113
    %260 = vmatprep.subr.mxu0 0.0
    %261 = vmatpush2.msra.mxu0 %v112
    %262 = vmatprep.subr.mxu0 0.0
    %263 = vmatpush2.msra.mxu0 %v111
    %264 = vmatprep.subr.mxu0 0.0
    %265 = vmatpush2.msra.mxu0 %v110
    %266 = vmatprep.subr.mxu0 0.0
    %267 = vmatpush2.msra.mxu0 %v109
    %268 = vmatprep.subr.mxu0 0.0
    %269 = vmatpush2.msra.mxu0 %v108
    %270 = vmatprep.subr.mxu0 0.0
    %271 = vmatpush2.msra.mxu0 %v107
    %272 = vmatprep.mubr.f32.mxu0 %v28
    %273 = vmatmul.mubr.f32.gmra.mxu0 %v27
    %v274 = vpop.f32.mrf.mxu0
    %v275 = vadd.f32 %v153, %v274
    %v276 = vpop.f32.mrf.mxu0
    %277 = vmatprep.mubr.f32.mxu0 %v32
    %278 = vmatmul.mubr.f32.gmra.mxu0 %v31
    %v279 = vpop.f32.mrf.mxu0
    %v280 = vadd.f32 %v153, %v279
    %v281 = vpop.f32.mrf.mxu0
    %282 = vmatprep.mubr.f32.mxu0 %v36
    %283 = vmatmul.mubr.f32.gmra.mxu0 %v35
    %v284 = vpop.f32.mrf.mxu0
    %v285 = vadd.f32 %v153, %v284
    %v286 = vpop.f32.mrf.mxu0
    %287 = vmatprep.mubr.f32.mxu0 %v40
    %288 = vmatmul.mubr.f32.gmra.mxu0 %v39
    %v289 = vpop.f32.mrf.mxu0
    %v290 = vadd.f32 %v153, %v289
    %v291 = vpop.f32.mrf.mxu0
    %292 = vmatprep.mubr.f32.mxu0 %v44
    %293 = vmatmul.mubr.f32.gmra.mxu0 %v43
    %v294 = vpop.f32.mrf.mxu0
    %v295 = vadd.f32 %v153, %v294
    %v296 = vpop.f32.mrf.mxu0
    %297 = vmatprep.mubr.f32.mxu0 %v48
    %298 = vmatmul.mubr.f32.gmra.mxu0 %v47
    %v299 = vpop.f32.mrf.mxu0
    %v300 = vadd.f32 %v153, %v299
    %v301 = vpop.f32.mrf.mxu0
    %302 = vmatprep.mubr.f32.mxu0 %v52
    %303 = vmatmul.mubr.f32.gmra.mxu0 %v51
    %v304 = vpop.f32.mrf.mxu0
    %v305 = vadd.f32 %v153, %v304
    %v306 = vpop.f32.mrf.mxu0
    %307 = vmatprep.mubr.f32.mxu0 %v56
    %308 = vmatmul.mubr.f32.gmra.mxu0 %v55
    %v309 = vpop.f32.mrf.mxu0
    %v310 = vadd.f32 %v153, %v309
    %v311 = vpop.f32.mrf.mxu0
    %312 = vmatprep.mubr.f32.mxu0 %v60
    %313 = vmatmul.mubr.f32.gmra.mxu0 %v59
    %v314 = vpop.f32.mrf.mxu0
    %v315 = vadd.f32 %v153, %v314
    %v316 = vpop.f32.mrf.mxu0
    %317 = vmatprep.mubr.f32.mxu0 %v64
    %318 = vmatmul.mubr.f32.gmra.mxu0 %v63
    %v319 = vpop.f32.mrf.mxu0
    %v320 = vadd.f32 %v153, %v319
    %v321 = vpop.f32.mrf.mxu0
    %322 = vmatprep.mubr.f32.mxu0 %v68
    %323 = vmatmul.mubr.f32.gmra.mxu0 %v67
    %v324 = vpop.f32.mrf.mxu0
    %v325 = vadd.f32 %v153, %v324
    %v326 = vpop.f32.mrf.mxu0
    %327 = vmatprep.mubr.f32.mxu0 %v72
    %328 = vmatmul.mubr.f32.gmra.mxu0 %v71
    %v329 = vpop.f32.mrf.mxu0
    %v330 = vadd.f32 %v153, %v329
    %v331 = vpop.f32.mrf.mxu0
    %332 = vmatprep.mubr.f32.mxu0 %v76
    %333 = vmatmul.mubr.f32.gmra.mxu0 %v75
    %v334 = vpop.f32.mrf.mxu0
    %v335 = vadd.f32 %v153, %v334
    %v336 = vpop.f32.mrf.mxu0
    %337 = vmatprep.mubr.f32.mxu0 %v80
    %338 = vmatmul.mubr.f32.gmra.mxu0 %v79
    %v339 = vpop.f32.mrf.mxu0
    %v340 = vadd.f32 %v153, %v339
    %v341 = vpop.f32.mrf.mxu0
    %342 = vmatprep.mubr.f32.mxu0 %v84
    %343 = vmatmul.mubr.f32.gmra.mxu0 %v83
    %v344 = vpop.f32.mrf.mxu0
    %v345 = vadd.f32 %v153, %v344
    %v346 = vpop.f32.mrf.mxu0
    %347 = vmatprep.mubr.f32.mxu0 %v88
    %348 = vmatmul.mubr.f32.gmra.mxu0 %v87
    %v349 = vpop.f32.mrf.mxu0
    %v350 = vadd.f32 %v153, %v349
    %v351 = vpop.f32.mrf.mxu0
    %352 = vdwg.mxu0
    %353 = vmatprep.subr.mxu0 0.0
    %354 = vmatpush1.msra.mxu0 %v138
    %355 = vmatprep.subr.mxu0 0.0
    %356 = vmatpush1.msra.mxu0 %v137
    %357 = vmatprep.subr.mxu0 0.0
    %358 = vmatpush1.msra.mxu0 %v136
    %359 = vmatprep.subr.mxu0 0.0
    %360 = vmatpush1.msra.mxu0 %v135
    %361 = vmatprep.subr.mxu0 0.0
    %362 = vmatpush1.msra.mxu0 %v134
    %363 = vmatprep.subr.mxu0 0.0
    %364 = vmatpush1.msra.mxu0 %v133
    %365 = vmatprep.subr.mxu0 0.0
    %366 = vmatpush1.msra.mxu0 %v132
    %367 = vmatprep.subr.mxu0 0.0
    %368 = vmatpush1.msra.mxu0 %v131
    %369 = vmatprep.subr.mxu0 0.0
    %370 = vmatpush1.msra.mxu0 %v130
    %371 = vmatprep.subr.mxu0 0.0
    %372 = vmatpush1.msra.mxu0 %v129
    %373 = vmatprep.subr.mxu0 0.0
    %374 = vmatpush1.msra.mxu0 %v128
    %375 = vmatprep.subr.mxu0 0.0
    %376 = vmatpush1.msra.mxu0 %v127
    %377 = vmatprep.subr.mxu0 0.0
    %378 = vmatpush1.msra.mxu0 %v126
    %379 = vmatprep.subr.mxu0 0.0
    %380 = vmatpush1.msra.mxu0 %v125
    %381 = vmatprep.subr.mxu0 0.0
    %382 = vmatpush1.msra.mxu0 %v124
    %383 = vmatprep.subr.mxu0 0.0
    %384 = vmatpush1.msra.mxu0 %v123
    %385 = vmatprep.subr.mxu0 0.0
    %386 = vmatpush2.msra.mxu0 0.0
    %387 = vmatprep.subr.mxu0 0.0
    %388 = vmatpush2.msra.mxu0 0.0
    %389 = vmatprep.subr.mxu0 0.0
    %390 = vmatpush2.msra.mxu0 0.0
    %391 = vmatprep.subr.mxu0 0.0
    %392 = vmatpush2.msra.mxu0 0.0
    %393 = vmatprep.subr.mxu0 0.0
    %394 = vmatpush2.msra.mxu0 0.0
    %395 = vmatprep.subr.mxu0 0.0
    %396 = vmatpush2.msra.mxu0 0.0
    %397 = vmatprep.subr.mxu0 0.0
    %398 = vmatpush2.msra.mxu0 0.0
    %399 = vmatprep.subr.mxu0 0.0
    %400 = vmatpush2.msra.mxu0 %v206
    %401 = vmatprep.subr.mxu0 0.0
    %402 = vmatpush2.msra.mxu0 %v146
    %403 = vmatprep.subr.mxu0 0.0
    %404 = vmatpush2.msra.mxu0 %v145
    %405 = vmatprep.subr.mxu0 0.0
    %406 = vmatpush2.msra.mxu0 %v144
    %407 = vmatprep.subr.mxu0 0.0
    %408 = vmatpush2.msra.mxu0 %v143
    %409 = vmatprep.subr.mxu0 0.0
    %410 = vmatpush2.msra.mxu0 %v142
    %411 = vmatprep.subr.mxu0 0.0
    %412 = vmatpush2.msra.mxu0 %v141
    %413 = vmatprep.subr.mxu0 0.0
    %414 = vmatpush2.msra.mxu0 %v140
    %415 = vmatprep.subr.mxu0 0.0
    %416 = vmatpush2.msra.mxu0 %v139
    %417 = vmatprep.mubr.f32.mxu0 %v157
    %418 = vmatmul.mubr.f32.gmra.mxu0 %v29
    %v419 = vpop.f32.mrf.mxu0
    %v420 = vadd.f32 %v275, %v419
    %v421 = vpop.f32.mrf.mxu0
    %422 = vmatprep.mubr.f32.mxu0 %v160
    %423 = vmatmul.mubr.f32.gmra.mxu0 %v33
    %v424 = vpop.f32.mrf.mxu0
    %v425 = vadd.f32 %v280, %v424
    %v426 = vpop.f32.mrf.mxu0
    %427 = vmatprep.mubr.f32.mxu0 %v163
    %428 = vmatmul.mubr.f32.gmra.mxu0 %v37
    %v429 = vpop.f32.mrf.mxu0
    %v430 = vadd.f32 %v285, %v429
    %v431 = vpop.f32.mrf.mxu0
    %432 = vmatprep.mubr.f32.mxu0 %v166
    %433 = vmatmul.mubr.f32.gmra.mxu0 %v41
    %v434 = vpop.f32.mrf.mxu0
    %v435 = vadd.f32 %v290, %v434
    %v436 = vpop.f32.mrf.mxu0
    %437 = vmatprep.mubr.f32.mxu0 %v169
    %438 = vmatmul.mubr.f32.gmra.mxu0 %v45
    %v439 = vpop.f32.mrf.mxu0
    %v440 = vadd.f32 %v295, %v439
    %v441 = vpop.f32.mrf.mxu0
    %442 = vmatprep.mubr.f32.mxu0 %v172
    %443 = vmatmul.mubr.f32.gmra.mxu0 %v49
    %v444 = vpop.f32.mrf.mxu0
    %v445 = vadd.f32 %v300, %v444
    %v446 = vpop.f32.mrf.mxu0
    %447 = vmatprep.mubr.f32.mxu0 %v175
    %448 = vmatmul.mubr.f32.gmra.mxu0 %v53
    %v449 = vpop.f32.mrf.mxu0
    %v450 = vadd.f32 %v305, %v449
    %v451 = vpop.f32.mrf.mxu0
    %452 = vmatprep.mubr.f32.mxu0 %v178
    %453 = vmatmul.mubr.f32.gmra.mxu0 %v57
    %v454 = vpop.f32.mrf.mxu0
    %v455 = vadd.f32 %v310, %v454
    %v456 = vpop.f32.mrf.mxu0
    %457 = vmatprep.mubr.f32.mxu0 %v181
    %458 = vmatmul.mubr.f32.gmra.mxu0 %v61
    %v459 = vpop.f32.mrf.mxu0
    %v460 = vadd.f32 %v315, %v459
    %v461 = vpop.f32.mrf.mxu0
    %462 = vmatprep.mubr.f32.mxu0 %v184
    %463 = vmatmul.mubr.f32.gmra.mxu0 %v65
    %v464 = vpop.f32.mrf.mxu0
    %v465 = vadd.f32 %v320, %v464
    %v466 = vpop.f32.mrf.mxu0
    %467 = vmatprep.mubr.f32.mxu0 %v187
    %468 = vmatmul.mubr.f32.gmra.mxu0 %v69
    %v469 = vpop.f32.mrf.mxu0
    %v470 = vadd.f32 %v325, %v469
    %v471 = vpop.f32.mrf.mxu0
    %472 = vmatprep.mubr.f32.mxu0 %v190
    %473 = vmatmul.mubr.f32.gmra.mxu0 %v73
    %v474 = vpop.f32.mrf.mxu0
    %v475 = vadd.f32 %v330, %v474
    %v476 = vpop.f32.mrf.mxu0
    %477 = vmatprep.mubr.f32.mxu0 %v193
    %478 = vmatmul.mubr.f32.gmra.mxu0 %v77
    %v479 = vpop.f32.mrf.mxu0
    %v480 = vadd.f32 %v335, %v479
    %v481 = vpop.f32.mrf.mxu0
    %482 = vmatprep.mubr.f32.mxu0 %v196
    %483 = vmatmul.mubr.f32.gmra.mxu0 %v81
    %v484 = vpop.f32.mrf.mxu0
    %v485 = vadd.f32 %v340, %v484
    %v486 = vpop.f32.mrf.mxu0
    %487 = vmatprep.mubr.f32.mxu0 %v199
    %488 = vmatmul.mubr.f32.gmra.mxu0 %v85
    %v489 = vpop.f32.mrf.mxu0
    %v490 = vadd.f32 %v345, %v489
    %v491 = vpop.f32.mrf.mxu0
    %492 = vmatprep.mubr.f32.mxu0 %v202
    %493 = vmatmul.mubr.f32.gmra.mxu0 %v89
    %v494 = vpop.f32.mrf.mxu0
    %v495 = vadd.f32 %v350, %v494
    %v496 = vpop.f32.mrf.mxu0
    %497 = vdwg.mxu0
    %v498 = vmax.f32 %v420, 0.0
    %v499 = vmax.f32 %v425, 0.0
    %v500 = vmax.f32 %v430, 0.0
    %v501 = vmax.f32 %v435, 0.0
    %v502 = vmax.f32 %v440, 0.0
    %v503 = vmax.f32 %v445, 0.0
    %v504 = vmax.f32 %v450, 0.0
    %v505 = vmax.f32 %v455, 0.0
    %v506 = vmax.f32 %v460, 0.0
    %v507 = vmax.f32 %v465, 0.0
    %v508 = vmax.f32 %v470, 0.0
    %v509 = vmax.f32 %v475, 0.0
    %v510 = vmax.f32 %v480, 0.0
    %v511 = vmax.f32 %v485, 0.0
    %v512 = vmax.f32 %v490, 0.0
    %v513 = vmax.f32 %v495, 0.0
    %v514 = vmin.f32 %v498, 20.0
    %v515 = vmin.f32 %v499, 20.0
    %v516 = vmin.f32 %v500, 20.0
    %v517 = vmin.f32 %v501, 20.0
    %v518 = vmin.f32 %v502, 20.0
    %v519 = vmin.f32 %v503, 20.0
    %v520 = vmin.f32 %v504, 20.0
    %v521 = vmin.f32 %v505, 20.0
    %v522 = vmin.f32 %v506, 20.0
    %v523 = vmin.f32 %v507, 20.0
    %v524 = vmin.f32 %v508, 20.0
    %v525 = vmin.f32 %v509, 20.0
    %v526 = vmin.f32 %v510, 20.0
    %v527 = vmin.f32 %v511, 20.0
    %v528 = vmin.f32 %v512, 20.0
    %v529 = vmin.f32 %v513, 20.0
    %v530 = vld [vmem:[%s3] sm:$0xff]
    %v531 = vld [vmem:[%s3 + $0x8] sm:$0xff]
    %v532 = vld [vmem:[%s3 + $0x10] sm:$0xff]
    %v533 = vld [vmem:[%s3 + $0x18] sm:$0xff]
    %v534 = vld [vmem:[%s3 + $0x20] sm:$0xff]
    %v535 = vld [vmem:[%s3 + $0x28] sm:$0xff]
    %v536 = vld [vmem:[%s3 + $0x30] sm:$0xff]
    %v537 = vld [vmem:[%s3 + $0x38] sm:$0xff]
    %v538 = vld [vmem:[%s3 + $0x40] sm:$0xff]
    %v539 = vld [vmem:[%s3 + $0x48] sm:$0xff]
    %v540 = vld [vmem:[%s3 + $0x50] sm:$0xff]
    %v541 = vld [vmem:[%s3 + $0x58] sm:$0xff]
    %v542 = vld [vmem:[%s3 + $0x60] sm:$0xff]
    %v543 = vld [vmem:[%s3 + $0x68] sm:$0xff]
    %v544 = vld [vmem:[%s3 + $0x70] sm:$0xff]
    %v545 = vld [vmem:[%s3 + $0x78] sm:$0xff]
    %547 = vset.pattern.permute.xlu0 0
    %548 = vperm.xlu0 %547, %v530
    %v549 = vpop.permute.xlu0 %548
    %552 = vset.pattern.permute.xlu0 0
    %553 = vperm.xlu0 %552, %v531
    %v554 = vpop.permute.xlu0 %553
    %557 = vset.pattern.permute.xlu0 0
    %558 = vperm.xlu0 %557, %v532
    %v559 = vpop.permute.xlu0 %558
    %562 = vset.pattern.permute.xlu0 0
    %563 = vperm.xlu0 %562, %v533
    %v564 = vpop.permute.xlu0 %563
    %567 = vset.pattern.permute.xlu0 0
    %568 = vperm.xlu0 %567, %v534
    %v569 = vpop.permute.xlu0 %568
    %572 = vset.pattern.permute.xlu0 0
    %573 = vperm.xlu0 %572, %v535
    %v574 = vpop.permute.xlu0 %573
    %577 = vset.pattern.permute.xlu0 0
    %578 = vperm.xlu0 %577, %v536
    %v579 = vpop.permute.xlu0 %578
    %582 = vset.pattern.permute.xlu0 0
    %583 = vperm.xlu0 %582, %v537
    %v584 = vpop.permute.xlu0 %583
    %587 = vset.pattern.permute.xlu0 0
    %588 = vperm.xlu0 %587, %v538
    %v589 = vpop.permute.xlu0 %588
    %592 = vset.pattern.permute.xlu0 0
    %593 = vperm.xlu0 %592, %v539
    %v594 = vpop.permute.xlu0 %593
    %597 = vset.pattern.permute.xlu0 0
    %598 = vperm.xlu0 %597, %v540
    %v599 = vpop.permute.xlu0 %598
    %602 = vset.pattern.permute.xlu0 0
    %603 = vperm.xlu0 %602, %v541
    %v604 = vpop.permute.xlu0 %603
    %607 = vset.pattern.permute.xlu0 0
    %608 = vperm.xlu0 %607, %v542
    %v609 = vpop.permute.xlu0 %608
    %612 = vset.pattern.permute.xlu0 0
    %613 = vperm.xlu0 %612, %v543
    %v614 = vpop.permute.xlu0 %613
    %617 = vset.pattern.permute.xlu0 0
    %618 = vperm.xlu0 %617, %v544
    %v619 = vpop.permute.xlu0 %618
    %622 = vset.pattern.permute.xlu0 0
    %623 = vperm.xlu0 %622, %v545
    %v624 = vpop.permute.xlu0 %623
    %v626 = vmul.f32 %v514, %v549
    %v627 = vmul.f32 %v515, %v554
    %v628 = vmul.f32 %v516, %v559
    %v629 = vmul.f32 %v517, %v564
    %v630 = vmul.f32 %v518, %v569
    %v631 = vmul.f32 %v519, %v574
    %v632 = vmul.f32 %v520, %v579
    %v633 = vmul.f32 %v521, %v584
    %v634 = vmul.f32 %v522, %v589
    %v635 = vmul.f32 %v523, %v594
    %v636 = vmul.f32 %v524, %v599
    %v637 = vmul.f32 %v525, %v604
    %v638 = vmul.f32 %v526, %v609
    %v639 = vmul.f32 %v527, %v614
    %v640 = vmul.f32 %v528, %v619
    %v641 = vmul.f32 %v529, %v624
    %v642 = vcombine.low 0.0, 0.0
    %v643 = vcombine.high 0.0, 0.0
    %v645 = vunpack.c.l.s4 1983009808
    %v646 = vunpack.c.0.s8 %v645
    %v647 = vlaneseq
    %v648 = vshrl.u32 %v647, 7
    %v649 = vsub.s32 %v646, %v648
    %v650 = vrot.slane %v642, %v649
    %v652 = vunpack.c.l.s4 1983009808
    %v653 = vunpack.c.0.s8 %v652
    %v654 = vlaneseq
    %v655 = vshrl.u32 %v654, 7
    %v656 = vsub.s32 %v653, %v655
    %v657 = vrot.slane %v643, %v656
    %v658 = vcombine.low 0.0, %v627
    %v659 = vcombine.high 0.0, %v627
    %v661 = vunpack.c.l.s4 1983009808
    %v662 = vunpack.c.0.s8 %v661
    %v663 = vlaneseq
    %v664 = vshrl.u32 %v663, 7
    %v665 = vsub.s32 %v662, %v664
    %v666 = vrot.slane %v658, %v665
    %v668 = vunpack.c.l.s4 1983009808
    %v669 = vunpack.c.0.s8 %v668
    %v670 = vlaneseq
    %v671 = vshrl.u32 %v670, 7
    %v672 = vsub.s32 %v669, %v671
    %v673 = vrot.slane %v659, %v672
    %v674 = vcombine.low %v626, %v628
    %v675 = vcombine.high %v626, %v628
    %v677 = vunpack.c.l.s4 1983009808
    %v678 = vunpack.c.0.s8 %v677
    %v679 = vlaneseq
    %v680 = vshrl.u32 %v679, 7
    %v681 = vsub.s32 %v678, %v680
    %v682 = vrot.slane %v674, %v681
    %v684 = vunpack.c.l.s4 1983009808
    %v685 = vunpack.c.0.s8 %v684
    %v686 = vlaneseq
    %v687 = vshrl.u32 %v686, 7
    %v688 = vsub.s32 %v685, %v687
    %v689 = vrot.slane %v675, %v688
    %v690 = vcombine.low %v650, %v650
    %v691 = vcombine.high %v650, %v650
    %v693 = vunpack.c.l.s4 1934713408
    %v694 = vunpack.c.0.s8 %v693
    %v695 = vlaneseq
    %v696 = vshrl.u32 %v695, 7
    %v697 = vsub.s32 %v694, %v696
    %v698 = vrot.slane %v690, %v697
    %v700 = vunpack.c.l.s4 1934713408
    %v701 = vunpack.c.0.s8 %v700
    %v702 = vlaneseq
    %v703 = vshrl.u32 %v702, 7
    %v704 = vsub.s32 %v701, %v703
    %v705 = vrot.slane %v691, %v704
    %v706 = vcombine.low %v657, %v657
    %v707 = vcombine.high %v657, %v657
    %v709 = vunpack.c.l.s4 1934713408
    %v710 = vunpack.c.0.s8 %v709
    %v711 = vlaneseq
    %v712 = vshrl.u32 %v711, 7
    %v713 = vsub.s32 %v710, %v712
    %v714 = vrot.slane %v706, %v713
    %v716 = vunpack.c.l.s4 1934713408
    %v717 = vunpack.c.0.s8 %v716
    %v718 = vlaneseq
    %v719 = vshrl.u32 %v718, 7
    %v720 = vsub.s32 %v717, %v719
    %v721 = vrot.slane %v707, %v720
    %v722 = vcombine.low %v666, %v682
    %v723 = vcombine.high %v666, %v682
    %v725 = vunpack.c.l.s4 1934713408
    %v726 = vunpack.c.0.s8 %v725
    %v727 = vlaneseq
    %v728 = vshrl.u32 %v727, 7
    %v729 = vsub.s32 %v726, %v728
    %v730 = vrot.slane %v722, %v729
    %v732 = vunpack.c.l.s4 1934713408
    %v733 = vunpack.c.0.s8 %v732
    %v734 = vlaneseq
    %v735 = vshrl.u32 %v734, 7
    %v736 = vsub.s32 %v733, %v735
    %v737 = vrot.slane %v723, %v736
    %v738 = vcombine.low %v673, %v689
    %v739 = vcombine.high %v673, %v689
    %v741 = vunpack.c.l.s4 1934713408
    %v742 = vunpack.c.0.s8 %v741
    %v743 = vlaneseq
    %v744 = vshrl.u32 %v743, 7
    %v745 = vsub.s32 %v742, %v744
    %v746 = vrot.slane %v738, %v745
    %v748 = vunpack.c.l.s4 1934713408
    %v749 = vunpack.c.0.s8 %v748
    %v750 = vlaneseq
    %v751 = vshrl.u32 %v750, 7
    %v752 = vsub.s32 %v749, %v751
    %v753 = vrot.slane %v739, %v752
    %v754 = vcombine.low %v698, %v730
    %v755 = vcombine.high %v698, %v730
    %v756 = vcombine.low %v705, %v737
    %v757 = vcombine.high %v705, %v737
    %v758 = vcombine.low %v714, %v746
    %v759 = vcombine.high %v714, %v746
    %v760 = vcombine.low %v721, %v753
    %v761 = vcombine.high %v721, %v753
    %v762 = vcombine.low %v629, %v631
    %v763 = vcombine.high %v629, %v631
    %v765 = vunpack.c.l.s4 1983009808
    %v766 = vunpack.c.0.s8 %v765
    %v767 = vlaneseq
    %v768 = vshrl.u32 %v767, 7
    %v769 = vsub.s32 %v766, %v768
    %v770 = vrot.slane %v762, %v769
    %v772 = vunpack.c.l.s4 1983009808
    %v773 = vunpack.c.0.s8 %v772
    %v774 = vlaneseq
    %v775 = vshrl.u32 %v774, 7
    %v776 = vsub.s32 %v773, %v775
    %v777 = vrot.slane %v763, %v776
    %v778 = vcombine.low %v630, %v632
    %v779 = vcombine.high %v630, %v632
    %v781 = vunpack.c.l.s4 1983009808
    %v782 = vunpack.c.0.s8 %v781
    %v783 = vlaneseq
    %v784 = vshrl.u32 %v783, 7
    %v785 = vsub.s32 %v782, %v784
    %v786 = vrot.slane %v778, %v785
    %v788 = vunpack.c.l.s4 1983009808
    %v789 = vunpack.c.0.s8 %v788
    %v790 = vlaneseq
    %v791 = vshrl.u32 %v790, 7
    %v792 = vsub.s32 %v789, %v791
    %v793 = vrot.slane %v779, %v792
    %v794 = vcombine.low %v633, 0.0
    %v795 = vcombine.high %v633, 0.0
    %v797 = vunpack.c.l.s4 1983009808
    %v798 = vunpack.c.0.s8 %v797
    %v799 = vlaneseq
    %v800 = vshrl.u32 %v799, 7
    %v801 = vsub.s32 %v798, %v800
    %v802 = vrot.slane %v794, %v801
    %v804 = vunpack.c.l.s4 1983009808
    %v805 = vunpack.c.0.s8 %v804
    %v806 = vlaneseq
    %v807 = vshrl.u32 %v806, 7
    %v808 = vsub.s32 %v805, %v807
    %v809 = vrot.slane %v795, %v808
    %v810 = vcombine.low %v770, %v786
    %v811 = vcombine.high %v770, %v786
    %v813 = vunpack.c.l.s4 1934713408
    %v814 = vunpack.c.0.s8 %v813
    %v815 = vlaneseq
    %v816 = vshrl.u32 %v815, 7
    %v817 = vsub.s32 %v814, %v816
    %v818 = vrot.slane %v810, %v817
    %v820 = vunpack.c.l.s4 1934713408
    %v821 = vunpack.c.0.s8 %v820
    %v822 = vlaneseq
    %v823 = vshrl.u32 %v822, 7
    %v824 = vsub.s32 %v821, %v823
    %v825 = vrot.slane %v811, %v824
    %v826 = vcombine.low %v777, %v793
    %v827 = vcombine.high %v777, %v793
    %v829 = vunpack.c.l.s4 1934713408
    %v830 = vunpack.c.0.s8 %v829
    %v831 = vlaneseq
    %v832 = vshrl.u32 %v831, 7
    %v833 = vsub.s32 %v830, %v832
    %v834 = vrot.slane %v826, %v833
    %v836 = vunpack.c.l.s4 1934713408
    %v837 = vunpack.c.0.s8 %v836
    %v838 = vlaneseq
    %v839 = vshrl.u32 %v838, 7
    %v840 = vsub.s32 %v837, %v839
    %v841 = vrot.slane %v827, %v840
    %v842 = vcombine.low %v802, %v650
    %v843 = vcombine.high %v802, %v650
    %v845 = vunpack.c.l.s4 1934713408
    %v846 = vunpack.c.0.s8 %v845
    %v847 = vlaneseq
    %v848 = vshrl.u32 %v847, 7
    %v849 = vsub.s32 %v846, %v848
    %v850 = vrot.slane %v842, %v849
    %v852 = vunpack.c.l.s4 1934713408
    %v853 = vunpack.c.0.s8 %v852
    %v854 = vlaneseq
    %v855 = vshrl.u32 %v854, 7
    %v856 = vsub.s32 %v853, %v855
    %v857 = vrot.slane %v843, %v856
    %v858 = vcombine.low %v809, %v657
    %v859 = vcombine.high %v809, %v657
    %v861 = vunpack.c.l.s4 1934713408
    %v862 = vunpack.c.0.s8 %v861
    %v863 = vlaneseq
    %v864 = vshrl.u32 %v863, 7
    %v865 = vsub.s32 %v862, %v864
    %v866 = vrot.slane %v858, %v865
    %v868 = vunpack.c.l.s4 1934713408
    %v869 = vunpack.c.0.s8 %v868
    %v870 = vlaneseq
    %v871 = vshrl.u32 %v870, 7
    %v872 = vsub.s32 %v869, %v871
    %v873 = vrot.slane %v859, %v872
    %v874 = vcombine.low %v818, %v850
    %v875 = vcombine.high %v818, %v850
    %v876 = vcombine.low %v825, %v857
    %v877 = vcombine.high %v825, %v857
    %v878 = vcombine.low %v834, %v866
    %v879 = vcombine.high %v834, %v866
    %v880 = vcombine.low %v841, %v873
    %v881 = vcombine.high %v841, %v873
    %v883 = vunpack.c.l.s4 1983009808
    %v884 = vunpack.c.0.s8 %v883
    %v885 = vlaneseq
    %v886 = vshrl.u32 %v885, 7
    %v887 = vsub.s32 %v884, %v886
    %v888 = vcombine.low 0.0, 0.0
    %v889 = vcombine.high 0.0, 0.0
    %v891 = vunpack.c.l.s4 1934713408
    %v892 = vunpack.c.0.s8 %v891
    %v893 = vlaneseq
    %v894 = vshrl.u32 %v893, 7
    %v895 = vsub.s32 %v892, %v894
    %v896 = vrot.slane %v888, %v895
    %v898 = vunpack.c.l.s4 1934713408
    %v899 = vunpack.c.0.s8 %v898
    %v900 = vlaneseq
    %v901 = vshrl.u32 %v900, 7
    %v902 = vsub.s32 %v899, %v901
    %v903 = vrot.slane %v889, %v902
    %v904 = vcombine.high %v896, 0.0
    %v905 = vcombine.high %v903, 0.0
    %v906 = vcombine.high %v714, 0.0
    %v907 = vcombine.high %v721, 0.0
    %v908 = vcombine.low 0.0, %v635
    %v909 = vcombine.high 0.0, %v635
    %v911 = vunpack.c.l.s4 1983009808
    %v912 = vunpack.c.0.s8 %v911
    %v913 = vlaneseq
    %v914 = vshrl.u32 %v913, 7
    %v915 = vsub.s32 %v912, %v914
    %v916 = vrot.slane %v908, %v915
    %v918 = vunpack.c.l.s4 1983009808
    %v919 = vunpack.c.0.s8 %v918
    %v920 = vlaneseq
    %v921 = vshrl.u32 %v920, 7
    %v922 = vsub.s32 %v919, %v921
    %v923 = vrot.slane %v909, %v922
    %v924 = vcombine.low %v634, %v636
    %v925 = vcombine.high %v634, %v636
    %v927 = vunpack.c.l.s4 1983009808
    %v928 = vunpack.c.0.s8 %v927
    %v929 = vlaneseq
    %v930 = vshrl.u32 %v929, 7
    %v931 = vsub.s32 %v928, %v930
    %v932 = vrot.slane %v924, %v931
    %v934 = vunpack.c.l.s4 1983009808
    %v935 = vunpack.c.0.s8 %v934
    %v936 = vlaneseq
    %v937 = vshrl.u32 %v936, 7
    %v938 = vsub.s32 %v935, %v937
    %v939 = vrot.slane %v925, %v938
    %v940 = vcombine.low %v916, %v932
    %v941 = vcombine.high %v916, %v932
    %v943 = vunpack.c.l.s4 1934713408
    %v944 = vunpack.c.0.s8 %v943
    %v945 = vlaneseq
    %v946 = vshrl.u32 %v945, 7
    %v947 = vsub.s32 %v944, %v946
    %v948 = vrot.slane %v940, %v947
    %v950 = vunpack.c.l.s4 1934713408
    %v951 = vunpack.c.0.s8 %v950
    %v952 = vlaneseq
    %v953 = vshrl.u32 %v952, 7
    %v954 = vsub.s32 %v951, %v953
    %v955 = vrot.slane %v941, %v954
    %v956 = vcombine.low %v923, %v939
    %v957 = vcombine.high %v923, %v939
    %v959 = vunpack.c.l.s4 1934713408
    %v960 = vunpack.c.0.s8 %v959
    %v961 = vlaneseq
    %v962 = vshrl.u32 %v961, 7
    %v963 = vsub.s32 %v960, %v962
    %v964 = vrot.slane %v956, %v963
    %v966 = vunpack.c.l.s4 1934713408
    %v967 = vunpack.c.0.s8 %v966
    %v968 = vlaneseq
    %v969 = vshrl.u32 %v968, 7
    %v970 = vsub.s32 %v967, %v969
    %v971 = vrot.slane %v957, %v970
    %v972 = vcombine.low %v698, %v948
    %v973 = vcombine.high %v698, %v948
    %v974 = vcombine.low %v705, %v955
    %v975 = vcombine.high %v705, %v955
    %v976 = vcombine.low %v714, %v964
    %v977 = vcombine.high %v714, %v964
    %v978 = vcombine.low %v721, %v971
    %v979 = vcombine.high %v721, %v971
    %v980 = vcombine.low %v637, %v639
    %v981 = vcombine.high %v637, %v639
    %v983 = vunpack.c.l.s4 1983009808
    %v984 = vunpack.c.0.s8 %v983
    %v985 = vlaneseq
    %v986 = vshrl.u32 %v985, 7
    %v987 = vsub.s32 %v984, %v986
    %v988 = vrot.slane %v980, %v987
    %v990 = vunpack.c.l.s4 1983009808
    %v991 = vunpack.c.0.s8 %v990
    %v992 = vlaneseq
    %v993 = vshrl.u32 %v992, 7
    %v994 = vsub.s32 %v991, %v993
    %v995 = vrot.slane %v981, %v994
    %v996 = vcombine.low %v638, %v640
    %v997 = vcombine.high %v638, %v640
    %v999 = vunpack.c.l.s4 1983009808
    %v1000 = vunpack.c.0.s8 %v999
    %v1001 = vlaneseq
    %v1002 = vshrl.u32 %v1001, 7
    %v1003 = vsub.s32 %v1000, %v1002
    %v1004 = vrot.slane %v996, %v1003
    %v1006 = vunpack.c.l.s4 1983009808
    %v1007 = vunpack.c.0.s8 %v1006
    %v1008 = vlaneseq
    %v1009 = vshrl.u32 %v1008, 7
    %v1010 = vsub.s32 %v1007, %v1009
    %v1011 = vrot.slane %v997, %v1010
    %v1012 = vcombine.low %v641, 0.0
    %v1013 = vcombine.high %v641, 0.0
    %v1015 = vunpack.c.l.s4 1983009808
    %v1016 = vunpack.c.0.s8 %v1015
    %v1017 = vlaneseq
    %v1018 = vshrl.u32 %v1017, 7
    %v1019 = vsub.s32 %v1016, %v1018
    %v1020 = vrot.slane %v1012, %v1019
    %v1022 = vunpack.c.l.s4 1983009808
    %v1023 = vunpack.c.0.s8 %v1022
    %v1024 = vlaneseq
    %v1025 = vshrl.u32 %v1024, 7
    %v1026 = vsub.s32 %v1023, %v1025
    %v1027 = vrot.slane %v1013, %v1026
    %v1028 = vcombine.low %v988, %v1004
    %v1029 = vcombine.high %v988, %v1004
    %v1031 = vunpack.c.l.s4 1934713408
    %v1032 = vunpack.c.0.s8 %v1031
    %v1033 = vlaneseq
    %v1034 = vshrl.u32 %v1033, 7
    %v1035 = vsub.s32 %v1032, %v1034
    %v1036 = vrot.slane %v1028, %v1035
    %v1038 = vunpack.c.l.s4 1934713408
    %v1039 = vunpack.c.0.s8 %v1038
    %v1040 = vlaneseq
    %v1041 = vshrl.u32 %v1040, 7
    %v1042 = vsub.s32 %v1039, %v1041
    %v1043 = vrot.slane %v1029, %v1042
    %v1044 = vcombine.low %v995, %v1011
    %v1045 = vcombine.high %v995, %v1011
    %v1047 = vunpack.c.l.s4 1934713408
    %v1048 = vunpack.c.0.s8 %v1047
    %v1049 = vlaneseq
    %v1050 = vshrl.u32 %v1049, 7
    %v1051 = vsub.s32 %v1048, %v1050
    %v1052 = vrot.slane %v1044, %v1051
    %v1054 = vunpack.c.l.s4 1934713408
    %v1055 = vunpack.c.0.s8 %v1054
    %v1056 = vlaneseq
    %v1057 = vshrl.u32 %v1056, 7
    %v1058 = vsub.s32 %v1055, %v1057
    %v1059 = vrot.slane %v1045, %v1058
    %v1060 = vcombine.low %v1020, %v650
    %v1061 = vcombine.high %v1020, %v650
    %v1063 = vunpack.c.l.s4 1934713408
    %v1064 = vunpack.c.0.s8 %v1063
    %v1065 = vlaneseq
    %v1066 = vshrl.u32 %v1065, 7
    %v1067 = vsub.s32 %v1064, %v1066
    %v1068 = vrot.slane %v1060, %v1067
    %v1070 = vunpack.c.l.s4 1934713408
    %v1071 = vunpack.c.0.s8 %v1070
    %v1072 = vlaneseq
    %v1073 = vshrl.u32 %v1072, 7
    %v1074 = vsub.s32 %v1071, %v1073
    %v1075 = vrot.slane %v1061, %v1074
    %v1076 = vcombine.low %v1027, %v657
    %v1077 = vcombine.high %v1027, %v657
    %v1079 = vunpack.c.l.s4 1934713408
    %v1080 = vunpack.c.0.s8 %v1079
    %v1081 = vlaneseq
    %v1082 = vshrl.u32 %v1081, 7
    %v1083 = vsub.s32 %v1080, %v1082
    %v1084 = vrot.slane %v1076, %v1083
    %v1086 = vunpack.c.l.s4 1934713408
    %v1087 = vunpack.c.0.s8 %v1086
    %v1088 = vlaneseq
    %v1089 = vshrl.u32 %v1088, 7
    %v1090 = vsub.s32 %v1087, %v1089
    %v1091 = vrot.slane %v1077, %v1090
    %v1092 = vcombine.low %v1036, %v1068
    %v1093 = vcombine.high %v1036, %v1068
    %v1094 = vcombine.low %v1043, %v1075
    %v1095 = vcombine.high %v1043, %v1075
    %v1096 = vcombine.low %v1052, %v1084
    %v1097 = vcombine.high %v1052, %v1084
    %v1098 = vcombine.low %v1059, %v1091
    %v1099 = vcombine.high %v1059, %v1091
    %1105 = vrot.lane.b32.xlu0 %v755, 32
    %v1106 = vpop.permute.xlu0 %1105
    %1107 = vrot.lane.b32.xlu0 %v875, 32
    %v1108 = vpop.permute.xlu0 %1107
    %1109 = vrot.lane.b32.xlu0 %v904, 32
    %v1110 = vpop.permute.xlu0 %1109
    %1111 = vrot.lane.b32.xlu0 %v973, 32
    %v1112 = vpop.permute.xlu0 %1111
    %1113 = vrot.lane.b32.xlu0 %v1093, 32
    %v1114 = vpop.permute.xlu0 %1113
    %1125 = vrot.lane.b32.xlu0 %v756, 64
    %v1126 = vpop.permute.xlu0 %1125
    %1127 = vrot.lane.b32.xlu0 %v876, 64
    %v1128 = vpop.permute.xlu0 %1127
    %1129 = vrot.lane.b32.xlu0 %v903, 64
    %v1130 = vpop.permute.xlu0 %1129
    %1131 = vrot.lane.b32.xlu0 %v974, 64
    %v1132 = vpop.permute.xlu0 %1131
    %1133 = vrot.lane.b32.xlu0 %v1094, 64
    %v1134 = vpop.permute.xlu0 %1133
    %1145 = vrot.lane.b32.xlu0 %v757, 96
    %v1146 = vpop.permute.xlu0 %1145
    %1147 = vrot.lane.b32.xlu0 %v877, 96
    %v1148 = vpop.permute.xlu0 %1147
    %1149 = vrot.lane.b32.xlu0 %v905, 96
    %v1150 = vpop.permute.xlu0 %1149
    %1151 = vrot.lane.b32.xlu0 %v975, 96
    %v1152 = vpop.permute.xlu0 %1151
    %1153 = vrot.lane.b32.xlu0 %v1095, 96
    %v1154 = vpop.permute.xlu0 %1153
    %1165 = vrot.lane.b32.xlu0 %v759, 32
    %v1166 = vpop.permute.xlu0 %1165
    %1167 = vrot.lane.b32.xlu0 %v879, 32
    %v1168 = vpop.permute.xlu0 %1167
    %1169 = vrot.lane.b32.xlu0 %v906, 32
    %v1170 = vpop.permute.xlu0 %1169
    %1171 = vrot.lane.b32.xlu0 %v977, 32
    %v1172 = vpop.permute.xlu0 %1171
    %1173 = vrot.lane.b32.xlu0 %v1097, 32
    %v1174 = vpop.permute.xlu0 %1173
    %1185 = vrot.lane.b32.xlu0 %v760, 64
    %v1186 = vpop.permute.xlu0 %1185
    %1187 = vrot.lane.b32.xlu0 %v880, 64
    %v1188 = vpop.permute.xlu0 %1187
    %1189 = vrot.lane.b32.xlu0 %v721, 64
    %v1190 = vpop.permute.xlu0 %1189
    %1191 = vrot.lane.b32.xlu0 %v978, 64
    %v1192 = vpop.permute.xlu0 %1191
    %1193 = vrot.lane.b32.xlu0 %v1098, 64
    %v1194 = vpop.permute.xlu0 %1193
    %1205 = vrot.lane.b32.xlu0 %v761, 96
    %v1206 = vpop.permute.xlu0 %1205
    %1207 = vrot.lane.b32.xlu0 %v881, 96
    %v1208 = vpop.permute.xlu0 %1207
    %1209 = vrot.lane.b32.xlu0 %v907, 96
    %v1210 = vpop.permute.xlu0 %1209
    %1211 = vrot.lane.b32.xlu0 %v979, 96
    %v1212 = vpop.permute.xlu0 %1211
    %1213 = vrot.lane.b32.xlu0 %v1099, 96
    %v1214 = vpop.permute.xlu0 %1213
    %vm1220 = vcmask 261120
    %v1221 = vsel %vm1220, %v754, %v1106
    %v1222 = vsel %vm1220, %v874, %v1108
    %v1223 = vsel %vm1220, %v896, %v1110
    %v1224 = vsel %vm1220, %v972, %v1112
    %v1225 = vsel %vm1220, %v1092, %v1114
    %vm1226 = vcmask 523264
    %v1227 = vsel %vm1226, %v1221, %v1126
    %v1228 = vsel %vm1226, %v1222, %v1128
    %v1229 = vsel %vm1226, %v1223, %v1130
    %v1230 = vsel %vm1226, %v1224, %v1132
    %v1231 = vsel %vm1226, %v1225, %v1134
    %vm1232 = vcmask 785408
    %v1233 = vsel %vm1232, %v1227, %v1146
    %v1234 = vsel %vm1232, %v1228, %v1148
    %v1235 = vsel %vm1232, %v1229, %v1150
    %v1236 = vsel %vm1232, %v1230, %v1152
    %v1237 = vsel %vm1232, %v1231, %v1154
    %v1238 = vsel %vm1220, %v758, %v1166
    %v1239 = vsel %vm1220, %v878, %v1168
    %v1240 = vsel %vm1220, %v714, %v1170
    %v1241 = vsel %vm1220, %v976, %v1172
    %v1242 = vsel %vm1220, %v1096, %v1174
    %v1243 = vsel %vm1226, %v1238, %v1186
    %v1244 = vsel %vm1226, %v1239, %v1188
    %v1245 = vsel %vm1226, %v1240, %v1190
    %v1246 = vsel %vm1226, %v1241, %v1192
    %v1247 = vsel %vm1226, %v1242, %v1194
    %v1248 = vsel %vm1232, %v1243, %v1206
    %v1249 = vsel %vm1232, %v1244, %v1208
    %v1250 = vsel %vm1232, %v1245, %v1210
    %v1251 = vsel %vm1232, %v1246, %v1212
    %v1252 = vsel %vm1232, %v1247, %v1214
    %vm1261 = vcmask 1046528
    %v1262 = vrot.slane %v1233, 1
    %v1263 = vrot.slane %v1234, 1
    %v1264 = vsel %vm1261, %v1262, %v1263
    %v1265 = vrot.slane %v1248, 1
    %v1266 = vrot.slane %v1249, 1
    %v1267 = vsel %vm1261, %v1265, %v1266
    %v1268 = vrot.slane %v1236, 1
    %v1269 = vrot.slane %v1237, 1
    %v1270 = vsel %vm1261, %v1268, %v1269
    %v1271 = vrot.slane %v1251, 1
    %v1272 = vrot.slane %v1252, 1
    %v1273 = vsel %vm1261, %v1271, %v1272
    %vm1278 = vcmask 1045504
    %v1279 = vrot.slane %v1233, 2
    %v1280 = vrot.slane %v1234, 2
    %v1281 = vsel %vm1278, %v1279, %v1280
    %v1282 = vrot.slane %v1248, 2
    %v1283 = vrot.slane %v1249, 2
    %v1284 = vsel %vm1278, %v1282, %v1283
    %v1285 = vrot.slane %v1236, 2
    %v1286 = vrot.slane %v1237, 2
    %v1287 = vsel %vm1278, %v1285, %v1286
    %v1288 = vrot.slane %v1251, 2
    %v1289 = vrot.slane %v1252, 2
    %v1290 = vsel %vm1278, %v1288, %v1289
    %vm1295 = vcmask 1044480
    %v1296 = vrot.slane %v1233, 3
    %v1297 = vrot.slane %v1234, 3
    %v1298 = vsel %vm1295, %v1296, %v1297
    %v1299 = vrot.slane %v1248, 3
    %v1300 = vrot.slane %v1249, 3
    %v1301 = vsel %vm1295, %v1299, %v1300
    %v1302 = vrot.slane %v1236, 3
    %v1303 = vrot.slane %v1237, 3
    %v1304 = vsel %vm1295, %v1302, %v1303
    %v1305 = vrot.slane %v1251, 3
    %v1306 = vrot.slane %v1252, 3
    %v1307 = vsel %vm1295, %v1305, %v1306
    %vm1312 = vcmask 1043456
    %v1313 = vrot.slane %v1233, 4
    %v1314 = vrot.slane %v1234, 4
    %v1315 = vsel %vm1312, %v1313, %v1314
    %v1316 = vrot.slane %v1248, 4
    %v1317 = vrot.slane %v1249, 4
    %v1318 = vsel %vm1312, %v1316, %v1317
    %v1319 = vrot.slane %v1236, 4
    %v1320 = vrot.slane %v1237, 4
    %v1321 = vsel %vm1312, %v1319, %v1320
    %v1322 = vrot.slane %v1251, 4
    %v1323 = vrot.slane %v1252, 4
    %v1324 = vsel %vm1312, %v1322, %v1323
    %v1329 = vrot.slane %v1233, 5
    %v1330 = vrot.slane %v1234, 5
    %v1331 = vsel %vm204, %v1329, %v1330
    %v1332 = vrot.slane %v1248, 5
    %v1333 = vrot.slane %v1249, 5
    %v1334 = vsel %vm204, %v1332, %v1333
    %v1335 = vrot.slane %v1236, 5
    %v1336 = vrot.slane %v1237, 5
    %v1337 = vsel %vm204, %v1335, %v1336
    %v1338 = vrot.slane %v1251, 5
    %v1339 = vrot.slane %v1252, 5
    %v1340 = vsel %vm204, %v1338, %v1339
    %vm1345 = vcmask 1041408
    %v1346 = vrot.slane %v1233, 6
    %v1347 = vrot.slane %v1234, 6
    %v1348 = vsel %vm1345, %v1346, %v1347
    %v1349 = vrot.slane %v1248, 6
    %v1350 = vrot.slane %v1249, 6
    %v1351 = vsel %vm1345, %v1349, %v1350
    %v1352 = vrot.slane %v1236, 6
    %v1353 = vrot.slane %v1237, 6
    %v1354 = vsel %vm1345, %v1352, %v1353
    %v1355 = vrot.slane %v1251, 6
    %v1356 = vrot.slane %v1252, 6
    %v1357 = vsel %vm1345, %v1355, %v1356
    %vm1362 = vcmask 1040384
    %v1363 = vrot.slane %v1233, 7
    %v1364 = vrot.slane %v1234, 7
    %v1365 = vsel %vm1362, %v1363, %v1364
    %v1366 = vrot.slane %v1248, 7
    %v1367 = vrot.slane %v1249, 7
    %v1368 = vsel %vm1362, %v1366, %v1367
    %v1369 = vrot.slane %v1236, 7
    %v1370 = vrot.slane %v1237, 7
    %v1371 = vsel %vm1362, %v1369, %v1370
    %v1372 = vrot.slane %v1251, 7
    %v1373 = vrot.slane %v1252, 7
    %v1374 = vsel %vm1362, %v1372, %v1373
    %v1381 = vrot.slane %v1235, 1
    %v1382 = vsel %vm1261, %v1263, %v1381
    %v1383 = vrot.slane %v1250, 1
    %v1384 = vsel %vm1261, %v1266, %v1383
    %v1385 = vsel %vm1261, %v1269, %v1381
    %v1386 = vsel %vm1261, %v1272, %v1383
    %v1391 = vrot.slane %v1235, 2
    %v1392 = vsel %vm1278, %v1280, %v1391
    %v1393 = vrot.slane %v1250, 2
    %v1394 = vsel %vm1278, %v1283, %v1393
    %v1395 = vsel %vm1278, %v1286, %v1391
    %v1396 = vsel %vm1278, %v1289, %v1393
    %v1401 = vld [vmem:[%s4] sm:$0xff]
    %v1402 = vld [vmem:[%s4 + $0x8] sm:$0xff]
    %v1403 = vld [vmem:[%s4 + $0x10] sm:$0xff]
    %v1404 = vld [vmem:[%s4 + $0x18] sm:$0xff]
    %v1405 = vld [vmem:[%s4 + $0x20] sm:$0xff]
    %v1406 = vld [vmem:[%s4 + $0x28] sm:$0xff]
    %v1407 = vld [vmem:[%s4 + $0x30] sm:$0xff]
    %v1408 = vld [vmem:[%s4 + $0x38] sm:$0xff]
    %v1409 = vld [vmem:[%s4 + $0x40] sm:$0xff]
    %v1410 = vld [vmem:[%s4 + $0x48] sm:$0xff]
    %v1411 = vld [vmem:[%s4 + $0x50] sm:$0xff]
    %v1412 = vld [vmem:[%s4 + $0x58] sm:$0xff]
    %v1413 = vld [vmem:[%s4 + $0x60] sm:$0xff]
    %v1414 = vld [vmem:[%s4 + $0x68] sm:$0xff]
    %v1415 = vld [vmem:[%s4 + $0x70] sm:$0xff]
    %v1416 = vld [vmem:[%s4 + $0x78] sm:$0xff]
    %v1417 = vld [vmem:[%s4 + $0x80] sm:$0xff]
    %v1418 = vld [vmem:[%s4 + $0x88] sm:$0xff]
    %v1419 = vld [vmem:[%s4 + $0x90] sm:$0xff]
    %v1420 = vld [vmem:[%s4 + $0x98] sm:$0xff]
    %v1421 = vld [vmem:[%s4 + $0xa0] sm:$0xff]
    %v1422 = vld [vmem:[%s4 + $0xa8] sm:$0xff]
    %v1423 = vld [vmem:[%s4 + $0xb0] sm:$0xff]
    %v1424 = vld [vmem:[%s4 + $0xb8] sm:$0xff]
    %v1425 = vld [vmem:[%s4 + $0xc0] sm:$0xff]
    %v1426 = vld [vmem:[%s4 + $0xc8] sm:$0xff]
    %v1427 = vld [vmem:[%s4 + $0xd0] sm:$0xff]
    %v1428 = vld [vmem:[%s4 + $0xd8] sm:$0xff]
    %v1429 = vld [vmem:[%s4 + $0xe0] sm:$0xff]
    %v1430 = vld [vmem:[%s4 + $0xe8] sm:$0xff]
    %v1431 = vld [vmem:[%s4 + $0xf0] sm:$0xff]
    %v1432 = vld [vmem:[%s4 + $0xf8] sm:$0xff]
    %v1433 = vld [vmem:[%s4 + $0x100] sm:$0xff]
    %v1434 = vld [vmem:[%s4 + $0x108] sm:$0xff]
    %v1435 = vld [vmem:[%s4 + $0x110] sm:$0xff]
    %v1436 = vld [vmem:[%s4 + $0x118] sm:$0xff]
    %v1437 = vld [vmem:[%s4 + $0x120] sm:$0xff]
    %v1438 = vld [vmem:[%s4 + $0x128] sm:$0xff]
    %v1439 = vld [vmem:[%s4 + $0x130] sm:$0xff]
    %v1440 = vld [vmem:[%s4 + $0x138] sm:$0xff]
    %v1441 = vld [vmem:[%s4 + $0x140] sm:$0xff]
    %v1442 = vld [vmem:[%s4 + $0x148] sm:$0xff]
    %v1443 = vld [vmem:[%s4 + $0x150] sm:$0xff]
    %v1444 = vld [vmem:[%s4 + $0x158] sm:$0xff]
    %v1445 = vld [vmem:[%s4 + $0x160] sm:$0xff]
    %v1446 = vld [vmem:[%s4 + $0x168] sm:$0xff]
    %v1447 = vld [vmem:[%s4 + $0x170] sm:$0xff]
    %v1448 = vld [vmem:[%s4 + $0x178] sm:$0xff]
    %v1449 = vld [vmem:[%s4 + $0x180] sm:$0xff]
    %v1450 = vld [vmem:[%s4 + $0x188] sm:$0xff]
    %v1451 = vld [vmem:[%s4 + $0x190] sm:$0xff]
    %v1452 = vld [vmem:[%s4 + $0x198] sm:$0xff]
    %v1453 = vld [vmem:[%s4 + $0x1a0] sm:$0xff]
    %v1454 = vld [vmem:[%s4 + $0x1a8] sm:$0xff]
    %v1455 = vld [vmem:[%s4 + $0x1b0] sm:$0xff]
    %v1456 = vld [vmem:[%s4 + $0x1b8] sm:$0xff]
    %v1457 = vld [vmem:[%s4 + $0x1c0] sm:$0xff]
    %v1458 = vld [vmem:[%s4 + $0x1c8] sm:$0xff]
    %v1459 = vld [vmem:[%s4 + $0x1d0] sm:$0xff]
    %v1460 = vld [vmem:[%s4 + $0x1d8] sm:$0xff]
    %v1461 = vld [vmem:[%s4 + $0x1e0] sm:$0xff]
    %v1462 = vld [vmem:[%s4 + $0x1e8] sm:$0xff]
    %v1463 = vld [vmem:[%s4 + $0x1f0] sm:$0xff]
    %v1464 = vld [vmem:[%s4 + $0x1f8] sm:$0xff]
    %v1465 = vld [vmem:[%s4 + $0x200] sm:$0xff]
    %v1466 = vld [vmem:[%s4 + $0x208] sm:$0xff]
    %v1467 = vld [vmem:[%s4 + $0x210] sm:$0xff]
    %v1468 = vld [vmem:[%s4 + $0x218] sm:$0xff]
    %v1469 = vld [vmem:[%s4 + $0x220] sm:$0xff]
    %v1470 = vld [vmem:[%s4 + $0x228] sm:$0xff]
    %v1471 = vld [vmem:[%s4 + $0x230] sm:$0xff]
    %v1472 = vld [vmem:[%s4 + $0x238] sm:$0xff]
    %v1473 = vld [vmem:[%s4 + $0x240] sm:$0xff]
    %v1474 = vld [vmem:[%s4 + $0x248] sm:$0xff]
    %v1475 = vld [vmem:[%s4 + $0x250] sm:$0xff]
    %v1476 = vld [vmem:[%s4 + $0x258] sm:$0xff]
    %v1477 = vld [vmem:[%s4 + $0x260] sm:$0xff]
    %v1478 = vld [vmem:[%s4 + $0x268] sm:$0xff]
    %v1479 = vld [vmem:[%s4 + $0x270] sm:$0xff]
    %v1480 = vld [vmem:[%s4 + $0x278] sm:$0xff]
    %v1481 = vld [vmem:[%s4 + $0x280] sm:$0xff]
    %v1482 = vld [vmem:[%s4 + $0x288] sm:$0xff]
    %v1483 = vld [vmem:[%s4 + $0x290] sm:$0xff]
    %v1484 = vld [vmem:[%s4 + $0x298] sm:$0xff]
    %v1485 = vld [vmem:[%s4 + $0x2a0] sm:$0xff]
    %v1486 = vld [vmem:[%s4 + $0x2a8] sm:$0xff]
    %v1487 = vld [vmem:[%s4 + $0x2b0] sm:$0xff]
    %v1488 = vld [vmem:[%s4 + $0x2b8] sm:$0xff]
    %v1489 = vld [vmem:[%s4 + $0x2c0] sm:$0xff]
    %v1490 = vld [vmem:[%s4 + $0x2c8] sm:$0xff]
    %v1491 = vld [vmem:[%s4 + $0x2d0] sm:$0xff]
    %v1492 = vld [vmem:[%s4 + $0x2d8] sm:$0xff]
    %v1493 = vld [vmem:[%s4 + $0x2e0] sm:$0xff]
    %v1494 = vld [vmem:[%s4 + $0x2e8] sm:$0xff]
    %v1495 = vld [vmem:[%s4 + $0x2f0] sm:$0xff]
    %v1496 = vld [vmem:[%s4 + $0x2f8] sm:$0xff]
    %v1497 = vld [vmem:[%s4 + $0x300] sm:$0xff]
    %v1498 = vld [vmem:[%s4 + $0x308] sm:$0xff]
    %v1499 = vld [vmem:[%s4 + $0x310] sm:$0xff]
    %v1500 = vld [vmem:[%s4 + $0x318] sm:$0xff]
    %v1501 = vld [vmem:[%s4 + $0x320] sm:$0xff]
    %v1502 = vld [vmem:[%s4 + $0x328] sm:$0xff]
    %v1503 = vld [vmem:[%s4 + $0x330] sm:$0xff]
    %v1504 = vld [vmem:[%s4 + $0x338] sm:$0xff]
    %v1505 = vld [vmem:[%s4 + $0x340] sm:$0xff]
    %v1506 = vld [vmem:[%s4 + $0x348] sm:$0xff]
    %v1507 = vld [vmem:[%s4 + $0x350] sm:$0xff]
    %v1508 = vld [vmem:[%s4 + $0x358] sm:$0xff]
    %v1509 = vld [vmem:[%s4 + $0x360] sm:$0xff]
    %v1510 = vld [vmem:[%s4 + $0x368] sm:$0xff]
    %v1511 = vld [vmem:[%s4 + $0x370] sm:$0xff]
    %v1512 = vld [vmem:[%s4 + $0x378] sm:$0xff]
    %v1513 = vld [vmem:[%s4 + $0x380] sm:$0xff]
    %v1514 = vld [vmem:[%s4 + $0x388] sm:$0xff]
    %v1515 = vld [vmem:[%s4 + $0x390] sm:$0xff]
    %v1516 = vld [vmem:[%s4 + $0x398] sm:$0xff]
    %v1517 = vld [vmem:[%s4 + $0x3a0] sm:$0xff]
    %v1518 = vld [vmem:[%s4 + $0x3a8] sm:$0xff]
    %v1519 = vld [vmem:[%s4 + $0x3b0] sm:$0xff]
    %v1520 = vld [vmem:[%s4 + $0x3b8] sm:$0xff]
    %v1521 = vld [vmem:[%s4 + $0x3c0] sm:$0xff]
    %v1522 = vld [vmem:[%s4 + $0x3c8] sm:$0xff]
    %v1523 = vld [vmem:[%s4 + $0x3d0] sm:$0xff]
    %v1524 = vld [vmem:[%s4 + $0x3d8] sm:$0xff]
    %v1525 = vld [vmem:[%s4 + $0x3e0] sm:$0xff]
    %v1526 = vld [vmem:[%s4 + $0x3e8] sm:$0xff]
    %v1527 = vld [vmem:[%s4 + $0x3f0] sm:$0xff]
    %v1528 = vld [vmem:[%s4 + $0x3f8] sm:$0xff]
    %v1529 = vld [vmem:[%s4 + $0x400] sm:$0xff]
    %v1530 = vld [vmem:[%s4 + $0x408] sm:$0xff]
    %v1531 = vld [vmem:[%s4 + $0x410] sm:$0xff]
    %v1532 = vld [vmem:[%s4 + $0x418] sm:$0xff]
    %v1533 = vld [vmem:[%s4 + $0x420] sm:$0xff]
    %v1534 = vld [vmem:[%s4 + $0x428] sm:$0xff]
    %v1535 = vld [vmem:[%s4 + $0x430] sm:$0xff]
    %v1536 = vld [vmem:[%s4 + $0x438] sm:$0xff]
    %v1537 = vld [vmem:[%s4 + $0x440] sm:$0xff]
    %v1538 = vld [vmem:[%s4 + $0x448] sm:$0xff]
    %v1539 = vld [vmem:[%s4 + $0x450] sm:$0xff]
    %v1540 = vld [vmem:[%s4 + $0x458] sm:$0xff]
    %v1541 = vld [vmem:[%s4 + $0x460] sm:$0xff]
    %v1542 = vld [vmem:[%s4 + $0x468] sm:$0xff]
    %v1543 = vld [vmem:[%s4 + $0x470] sm:$0xff]
    %v1544 = vld [vmem:[%s4 + $0x478] sm:$0xff]
    %v1545 = vld [vmem:[%s4 + $0x480] sm:$0xff]
    %v1546 = vld [vmem:[%s4 + $0x488] sm:$0xff]
    %v1547 = vld [vmem:[%s4 + $0x490] sm:$0xff]
    %v1548 = vld [vmem:[%s4 + $0x498] sm:$0xff]
    %v1549 = vld [vmem:[%s4 + $0x4a0] sm:$0xff]
    %v1550 = vld [vmem:[%s4 + $0x4a8] sm:$0xff]
    %v1551 = vld [vmem:[%s4 + $0x4b0] sm:$0xff]
    %v1552 = vld [vmem:[%s4 + $0x4b8] sm:$0xff]
    %v1553 = vld [vmem:[%s4 + $0x4c0] sm:$0xff]
    %v1554 = vld [vmem:[%s4 + $0x4c8] sm:$0xff]
    %v1555 = vld [vmem:[%s4 + $0x4d0] sm:$0xff]
    %v1556 = vld [vmem:[%s4 + $0x4d8] sm:$0xff]
    %v1557 = vld [vmem:[%s4 + $0x4e0] sm:$0xff]
    %v1558 = vld [vmem:[%s4 + $0x4e8] sm:$0xff]
    %v1559 = vld [vmem:[%s4 + $0x4f0] sm:$0xff]
    %v1560 = vld [vmem:[%s4 + $0x4f8] sm:$0xff]
    %v1561 = vld [vmem:[%s4 + $0x500] sm:$0xff]
    %v1562 = vld [vmem:[%s4 + $0x508] sm:$0xff]
    %v1563 = vld [vmem:[%s4 + $0x510] sm:$0xff]
    %v1564 = vld [vmem:[%s4 + $0x518] sm:$0xff]
    %v1565 = vld [vmem:[%s4 + $0x520] sm:$0xff]
    %v1566 = vld [vmem:[%s4 + $0x528] sm:$0xff]
    %v1567 = vld [vmem:[%s4 + $0x530] sm:$0xff]
    %v1568 = vld [vmem:[%s4 + $0x538] sm:$0xff]
    %v1569 = vld [vmem:[%s4 + $0x540] sm:$0xff]
    %v1570 = vld [vmem:[%s4 + $0x548] sm:$0xff]
    %v1571 = vld [vmem:[%s4 + $0x550] sm:$0xff]
    %v1572 = vld [vmem:[%s4 + $0x558] sm:$0xff]
    %v1573 = vld [vmem:[%s4 + $0x560] sm:$0xff]
    %v1574 = vld [vmem:[%s4 + $0x568] sm:$0xff]
    %v1575 = vld [vmem:[%s4 + $0x570] sm:$0xff]
    %v1576 = vld [vmem:[%s4 + $0x578] sm:$0xff]
    %v1577 = vld [vmem:[%s4 + $0x580] sm:$0xff]
    %v1578 = vld [vmem:[%s4 + $0x588] sm:$0xff]
    %v1579 = vld [vmem:[%s4 + $0x590] sm:$0xff]
    %v1580 = vld [vmem:[%s4 + $0x598] sm:$0xff]
    %v1581 = vld [vmem:[%s4 + $0x5a0] sm:$0xff]
    %v1582 = vld [vmem:[%s4 + $0x5a8] sm:$0xff]
    %v1583 = vld [vmem:[%s4 + $0x5b0] sm:$0xff]
    %v1584 = vld [vmem:[%s4 + $0x5b8] sm:$0xff]
    %v1585 = vld [vmem:[%s4 + $0x5c0] sm:$0xff]
    %v1586 = vld [vmem:[%s4 + $0x5c8] sm:$0xff]
    %v1587 = vld [vmem:[%s4 + $0x5d0] sm:$0xff]
    %v1588 = vld [vmem:[%s4 + $0x5d8] sm:$0xff]
    %v1589 = vld [vmem:[%s4 + $0x5e0] sm:$0xff]
    %v1590 = vld [vmem:[%s4 + $0x5e8] sm:$0xff]
    %v1591 = vld [vmem:[%s4 + $0x5f0] sm:$0xff]
    %v1592 = vld [vmem:[%s4 + $0x5f8] sm:$0xff]
    %v1593 = vld [vmem:[%s4 + $0x600] sm:$0xff]
    %v1594 = vld [vmem:[%s4 + $0x608] sm:$0xff]
    %v1595 = vld [vmem:[%s4 + $0x610] sm:$0xff]
    %v1596 = vld [vmem:[%s4 + $0x618] sm:$0xff]
    %v1597 = vld [vmem:[%s4 + $0x620] sm:$0xff]
    %v1598 = vld [vmem:[%s4 + $0x628] sm:$0xff]
    %v1599 = vld [vmem:[%s4 + $0x630] sm:$0xff]
    %v1600 = vld [vmem:[%s4 + $0x638] sm:$0xff]
    %v1601 = vld [vmem:[%s4 + $0x640] sm:$0xff]
    %v1602 = vld [vmem:[%s4 + $0x648] sm:$0xff]
    %v1603 = vld [vmem:[%s4 + $0x650] sm:$0xff]
    %v1604 = vld [vmem:[%s4 + $0x658] sm:$0xff]
    %v1605 = vld [vmem:[%s4 + $0x660] sm:$0xff]
    %v1606 = vld [vmem:[%s4 + $0x668] sm:$0xff]
    %v1607 = vld [vmem:[%s4 + $0x670] sm:$0xff]
    %v1608 = vld [vmem:[%s4 + $0x678] sm:$0xff]
    %v1609 = vld [vmem:[%s4 + $0x680] sm:$0xff]
    %v1610 = vld [vmem:[%s4 + $0x688] sm:$0xff]
    %v1611 = vld [vmem:[%s4 + $0x690] sm:$0xff]
    %v1612 = vld [vmem:[%s4 + $0x698] sm:$0xff]
    %v1613 = vld [vmem:[%s4 + $0x6a0] sm:$0xff]
    %v1614 = vld [vmem:[%s4 + $0x6a8] sm:$0xff]
    %v1615 = vld [vmem:[%s4 + $0x6b0] sm:$0xff]
    %v1616 = vld [vmem:[%s4 + $0x6b8] sm:$0xff]
    %v1617 = vld [vmem:[%s4 + $0x6c0] sm:$0xff]
    %v1618 = vld [vmem:[%s4 + $0x6c8] sm:$0xff]
    %v1619 = vld [vmem:[%s4 + $0x6d0] sm:$0xff]
    %v1620 = vld [vmem:[%s4 + $0x6d8] sm:$0xff]
    %v1621 = vld [vmem:[%s4 + $0x6e0] sm:$0xff]
    %v1622 = vld [vmem:[%s4 + $0x6e8] sm:$0xff]
    %v1623 = vld [vmem:[%s4 + $0x6f0] sm:$0xff]
    %v1624 = vld [vmem:[%s4 + $0x6f8] sm:$0xff]
    %v1625 = vld [vmem:[%s4 + $0x700] sm:$0xff]
    %v1626 = vld [vmem:[%s4 + $0x708] sm:$0xff]
    %v1627 = vld [vmem:[%s4 + $0x710] sm:$0xff]
    %v1628 = vld [vmem:[%s4 + $0x718] sm:$0xff]
    %v1629 = vld [vmem:[%s4 + $0x720] sm:$0xff]
    %v1630 = vld [vmem:[%s4 + $0x728] sm:$0xff]
    %v1631 = vld [vmem:[%s4 + $0x730] sm:$0xff]
    %v1632 = vld [vmem:[%s4 + $0x738] sm:$0xff]
    %v1633 = vld [vmem:[%s4 + $0x740] sm:$0xff]
    %v1634 = vld [vmem:[%s4 + $0x748] sm:$0xff]
    %v1635 = vld [vmem:[%s4 + $0x750] sm:$0xff]
    %v1636 = vld [vmem:[%s4 + $0x758] sm:$0xff]
    %v1637 = vld [vmem:[%s4 + $0x760] sm:$0xff]
    %v1638 = vld [vmem:[%s4 + $0x768] sm:$0xff]
    %v1639 = vld [vmem:[%s4 + $0x770] sm:$0xff]
    %v1640 = vld [vmem:[%s4 + $0x778] sm:$0xff]
    %v1641 = vld [vmem:[%s4 + $0x780] sm:$0xff]
    %v1642 = vld [vmem:[%s4 + $0x788] sm:$0xff]
    %v1643 = vld [vmem:[%s4 + $0x790] sm:$0xff]
    %v1644 = vld [vmem:[%s4 + $0x798] sm:$0xff]
    %v1645 = vld [vmem:[%s4 + $0x7a0] sm:$0xff]
    %v1646 = vld [vmem:[%s4 + $0x7a8] sm:$0xff]
    %v1647 = vld [vmem:[%s4 + $0x7b0] sm:$0xff]
    %v1648 = vld [vmem:[%s4 + $0x7b8] sm:$0xff]
    %v1649 = vld [vmem:[%s4 + $0x7c0] sm:$0xff]
    %v1650 = vld [vmem:[%s4 + $0x7c8] sm:$0xff]
    %v1651 = vld [vmem:[%s4 + $0x7d0] sm:$0xff]
    %v1652 = vld [vmem:[%s4 + $0x7d8] sm:$0xff]
    %v1653 = vld [vmem:[%s4 + $0x7e0] sm:$0xff]
    %v1654 = vld [vmem:[%s4 + $0x7e8] sm:$0xff]
    %v1655 = vld [vmem:[%s4 + $0x7f0] sm:$0xff]
    %v1656 = vld [vmem:[%s4 + $0x7f8] sm:$0xff]
    %v1657 = vld [vmem:[%s4 + $0x800] sm:$0xff]
    %v1658 = vld [vmem:[%s4 + $0x808] sm:$0xff]
    %v1659 = vld [vmem:[%s4 + $0x810] sm:$0xff]
    %v1660 = vld [vmem:[%s4 + $0x818] sm:$0xff]
    %v1661 = vld [vmem:[%s4 + $0x820] sm:$0xff]
    %v1662 = vld [vmem:[%s4 + $0x828] sm:$0xff]
    %v1663 = vld [vmem:[%s4 + $0x830] sm:$0xff]
    %v1664 = vld [vmem:[%s4 + $0x838] sm:$0xff]
    %v1665 = vld [vmem:[%s4 + $0x840] sm:$0xff]
    %v1666 = vld [vmem:[%s4 + $0x848] sm:$0xff]
    %v1667 = vld [vmem:[%s4 + $0x850] sm:$0xff]
    %v1668 = vld [vmem:[%s4 + $0x858] sm:$0xff]
    %v1669 = vld [vmem:[%s4 + $0x860] sm:$0xff]
    %v1670 = vld [vmem:[%s4 + $0x868] sm:$0xff]
    %v1671 = vld [vmem:[%s4 + $0x870] sm:$0xff]
    %v1672 = vld [vmem:[%s4 + $0x878] sm:$0xff]
    %v1673 = vld [vmem:[%s4 + $0x880] sm:$0xff]
    %v1674 = vld [vmem:[%s4 + $0x888] sm:$0xff]
    %v1675 = vld [vmem:[%s4 + $0x890] sm:$0xff]
    %v1676 = vld [vmem:[%s4 + $0x898] sm:$0xff]
    %v1677 = vld [vmem:[%s4 + $0x8a0] sm:$0xff]
    %v1678 = vld [vmem:[%s4 + $0x8a8] sm:$0xff]
    %v1679 = vld [vmem:[%s4 + $0x8b0] sm:$0xff]
    %v1680 = vld [vmem:[%s4 + $0x8b8] sm:$0xff]
    %v1681 = vld [vmem:[%s4 + $0x8c0] sm:$0xff]
    %v1682 = vld [vmem:[%s4 + $0x8c8] sm:$0xff]
    %v1683 = vld [vmem:[%s4 + $0x8d0] sm:$0xff]
    %v1684 = vld [vmem:[%s4 + $0x8d8] sm:$0xff]
    %v1685 = vld [vmem:[%s4 + $0x8e0] sm:$0xff]
    %v1686 = vld [vmem:[%s4 + $0x8e8] sm:$0xff]
    %v1687 = vld [vmem:[%s4 + $0x8f0] sm:$0xff]
    %v1688 = vld [vmem:[%s4 + $0x8f8] sm:$0xff]
    %v1689 = vld [vmem:[%s4 + $0x900] sm:$0xff]
    %v1690 = vld [vmem:[%s4 + $0x908] sm:$0xff]
    %v1691 = vld [vmem:[%s4 + $0x910] sm:$0xff]
    %v1692 = vld [vmem:[%s4 + $0x918] sm:$0xff]
    %v1693 = vld [vmem:[%s4 + $0x920] sm:$0xff]
    %v1694 = vld [vmem:[%s4 + $0x928] sm:$0xff]
    %v1695 = vld [vmem:[%s4 + $0x930] sm:$0xff]
    %v1696 = vld [vmem:[%s4 + $0x938] sm:$0xff]
    %v1697 = vld [vmem:[%s4 + $0x940] sm:$0xff]
    %v1698 = vld [vmem:[%s4 + $0x948] sm:$0xff]
    %v1699 = vld [vmem:[%s4 + $0x950] sm:$0xff]
    %v1700 = vld [vmem:[%s4 + $0x958] sm:$0xff]
    %v1701 = vld [vmem:[%s4 + $0x960] sm:$0xff]
    %v1702 = vld [vmem:[%s4 + $0x968] sm:$0xff]
    %v1703 = vld [vmem:[%s4 + $0x970] sm:$0xff]
    %v1704 = vld [vmem:[%s4 + $0x978] sm:$0xff]
    %v1705 = vld [vmem:[%s4 + $0x980] sm:$0xff]
    %v1706 = vld [vmem:[%s4 + $0x988] sm:$0xff]
    %v1707 = vld [vmem:[%s4 + $0x990] sm:$0xff]
    %v1708 = vld [vmem:[%s4 + $0x998] sm:$0xff]
    %v1709 = vld [vmem:[%s4 + $0x9a0] sm:$0xff]
    %v1710 = vld [vmem:[%s4 + $0x9a8] sm:$0xff]
    %v1711 = vld [vmem:[%s4 + $0x9b0] sm:$0xff]
    %v1712 = vld [vmem:[%s4 + $0x9b8] sm:$0xff]
    %v1713 = vld [vmem:[%s4 + $0x9c0] sm:$0xff]
    %v1714 = vld [vmem:[%s4 + $0x9c8] sm:$0xff]
    %v1715 = vld [vmem:[%s4 + $0x9d0] sm:$0xff]
    %v1716 = vld [vmem:[%s4 + $0x9d8] sm:$0xff]
    %v1717 = vld [vmem:[%s4 + $0x9e0] sm:$0xff]
    %v1718 = vld [vmem:[%s4 + $0x9e8] sm:$0xff]
    %v1719 = vld [vmem:[%s4 + $0x9f0] sm:$0xff]
    %v1720 = vld [vmem:[%s4 + $0x9f8] sm:$0xff]
    %v1721 = vld [vmem:[%s4 + $0xa00] sm:$0xff]
    %v1722 = vld [vmem:[%s4 + $0xa08] sm:$0xff]
    %v1723 = vld [vmem:[%s4 + $0xa10] sm:$0xff]
    %v1724 = vld [vmem:[%s4 + $0xa18] sm:$0xff]
    %v1725 = vld [vmem:[%s4 + $0xa20] sm:$0xff]
    %v1726 = vld [vmem:[%s4 + $0xa28] sm:$0xff]
    %v1727 = vld [vmem:[%s4 + $0xa30] sm:$0xff]
    %v1728 = vld [vmem:[%s4 + $0xa38] sm:$0xff]
    %v1729 = vld [vmem:[%s4 + $0xa40] sm:$0xff]
    %v1730 = vld [vmem:[%s4 + $0xa48] sm:$0xff]
    %v1731 = vld [vmem:[%s4 + $0xa50] sm:$0xff]
    %v1732 = vld [vmem:[%s4 + $0xa58] sm:$0xff]
    %v1733 = vld [vmem:[%s4 + $0xa60] sm:$0xff]
    %v1734 = vld [vmem:[%s4 + $0xa68] sm:$0xff]
    %v1735 = vld [vmem:[%s4 + $0xa70] sm:$0xff]
    %v1736 = vld [vmem:[%s4 + $0xa78] sm:$0xff]
    %v1737 = vld [vmem:[%s4 + $0xa80] sm:$0xff]
    %v1738 = vld [vmem:[%s4 + $0xa88] sm:$0xff]
    %v1739 = vld [vmem:[%s4 + $0xa90] sm:$0xff]
    %v1740 = vld [vmem:[%s4 + $0xa98] sm:$0xff]
    %v1741 = vld [vmem:[%s4 + $0xaa0] sm:$0xff]
    %v1742 = vld [vmem:[%s4 + $0xaa8] sm:$0xff]
    %v1743 = vld [vmem:[%s4 + $0xab0] sm:$0xff]
    %v1744 = vld [vmem:[%s4 + $0xab8] sm:$0xff]
    %v1745 = vld [vmem:[%s4 + $0xac0] sm:$0xff]
    %v1746 = vld [vmem:[%s4 + $0xac8] sm:$0xff]
    %v1747 = vld [vmem:[%s4 + $0xad0] sm:$0xff]
    %v1748 = vld [vmem:[%s4 + $0xad8] sm:$0xff]
    %v1749 = vld [vmem:[%s4 + $0xae0] sm:$0xff]
    %v1750 = vld [vmem:[%s4 + $0xae8] sm:$0xff]
    %v1751 = vld [vmem:[%s4 + $0xaf0] sm:$0xff]
    %v1752 = vld [vmem:[%s4 + $0xaf8] sm:$0xff]
    %v1753 = vld [vmem:[%s5] sm:$0x1]
    %v1755 = vlaneseq
    %v1756 = vshrl.u32 %v1755, 7
    %v1757 = vsub.s32 0, %v1756
    %v1758 = vrot.slane %v1753, %v1757
    %1760 = vmatprep.subr.mxu0 0.0
    %1761 = vmatpush1.msra.mxu0 %v1416
    %1762 = vmatprep.subr.mxu0 0.0
    %1763 = vmatpush1.msra.mxu0 %v1415
    %1764 = vmatprep.subr.mxu0 0.0
    %1765 = vmatpush1.msra.mxu0 %v1414
    %1766 = vmatprep.subr.mxu0 0.0
    %1767 = vmatpush1.msra.mxu0 %v1413
    %1768 = vmatprep.subr.mxu0 0.0
    %1769 = vmatpush1.msra.mxu0 %v1412
    %1770 = vmatprep.subr.mxu0 0.0
    %1771 = vmatpush1.msra.mxu0 %v1411
    %1772 = vmatprep.subr.mxu0 0.0
    %1773 = vmatpush1.msra.mxu0 %v1410
    %1774 = vmatprep.subr.mxu0 0.0
    %1775 = vmatpush1.msra.mxu0 %v1409
    %1776 = vmatprep.subr.mxu0 0.0
    %1777 = vmatpush1.msra.mxu0 %v1408
    %1778 = vmatprep.subr.mxu0 0.0
    %1779 = vmatpush1.msra.mxu0 %v1407
    %1780 = vmatprep.subr.mxu0 0.0
    %1781 = vmatpush1.msra.mxu0 %v1406
    %1782 = vmatprep.subr.mxu0 0.0
    %1783 = vmatpush1.msra.mxu0 %v1405
    %1784 = vmatprep.subr.mxu0 0.0
    %1785 = vmatpush1.msra.mxu0 %v1404
    %1786 = vmatprep.subr.mxu0 0.0
    %1787 = vmatpush1.msra.mxu0 %v1403
    %1788 = vmatprep.subr.mxu0 0.0
    %1789 = vmatpush1.msra.mxu0 %v1402
    %1790 = vmatprep.subr.mxu0 0.0
    %1791 = vmatpush1.msra.mxu0 %v1401
    %1792 = vmatprep.subr.mxu0 0.0
    %1793 = vmatpush2.msra.mxu0 %v1432
    %1794 = vmatprep.subr.mxu0 0.0
    %1795 = vmatpush2.msra.mxu0 %v1431
    %1796 = vmatprep.subr.mxu0 0.0
    %1797 = vmatpush2.msra.mxu0 %v1430
    %1798 = vmatprep.subr.mxu0 0.0
    %1799 = vmatpush2.msra.mxu0 %v1429
    %1800 = vmatprep.subr.mxu0 0.0
    %1801 = vmatpush2.msra.mxu0 %v1428
    %1802 = vmatprep.subr.mxu0 0.0
    %1803 = vmatpush2.msra.mxu0 %v1427
    %1804 = vmatprep.subr.mxu0 0.0
    %1805 = vmatpush2.msra.mxu0 %v1426
    %1806 = vmatprep.subr.mxu0 0.0
    %1807 = vmatpush2.msra.mxu0 %v1425
    %1808 = vmatprep.subr.mxu0 0.0
    %1809 = vmatpush2.msra.mxu0 %v1424
    %1810 = vmatprep.subr.mxu0 0.0
    %1811 = vmatpush2.msra.mxu0 %v1423
    %1812 = vmatprep.subr.mxu0 0.0
    %1813 = vmatpush2.msra.mxu0 %v1422
    %1814 = vmatprep.subr.mxu0 0.0
    %1815 = vmatpush2.msra.mxu0 %v1421
    %1816 = vmatprep.subr.mxu0 0.0
    %1817 = vmatpush2.msra.mxu0 %v1420
    %1818 = vmatprep.subr.mxu0 0.0
    %1819 = vmatpush2.msra.mxu0 %v1419
    %1820 = vmatprep.subr.mxu0 0.0
    %1821 = vmatpush2.msra.mxu0 %v1418
    %1822 = vmatprep.subr.mxu0 0.0
    %1823 = vmatpush2.msra.mxu0 %v1417
    %1824 = vmatprep.mubr.f32.mxu0 %v1248
    %1825 = vmatmul.mubr.f32.gmra.mxu0 %v1233
    %v1826 = vpop.f32.mrf.mxu0
    %v1827 = vadd.f32 %v1758, %v1826
    %v1828 = vpop.f32.mrf.mxu0
    %1829 = vmatprep.mubr.f32.mxu0 %v1251
    %1830 = vmatmul.mubr.f32.gmra.mxu0 %v1236
    %v1831 = vpop.f32.mrf.mxu0
    %v1832 = vadd.f32 %v1758, %v1831
    %v1833 = vpop.f32.mrf.mxu0
    %1834 = vdwg.mxu0
    %1835 = vmatprep.subr.mxu0 0.0
    %1836 = vmatpush1.msra.mxu0 %v1448
    %1837 = vmatprep.subr.mxu0 0.0
    %1838 = vmatpush1.msra.mxu0 %v1447
    %1839 = vmatprep.subr.mxu0 0.0
    %1840 = vmatpush1.msra.mxu0 %v1446
    %1841 = vmatprep.subr.mxu0 0.0
    %1842 = vmatpush1.msra.mxu0 %v1445
    %1843 = vmatprep.subr.mxu0 0.0
    %1844 = vmatpush1.msra.mxu0 %v1444
    %1845 = vmatprep.subr.mxu0 0.0
    %1846 = vmatpush1.msra.mxu0 %v1443
    %1847 = vmatprep.subr.mxu0 0.0
    %1848 = vmatpush1.msra.mxu0 %v1442
    %1849 = vmatprep.subr.mxu0 0.0
    %1850 = vmatpush1.msra.mxu0 %v1441
    %1851 = vmatprep.subr.mxu0 0.0
    %1852 = vmatpush1.msra.mxu0 %v1440
    %1853 = vmatprep.subr.mxu0 0.0
    %1854 = vmatpush1.msra.mxu0 %v1439
    %1855 = vmatprep.subr.mxu0 0.0
    %1856 = vmatpush1.msra.mxu0 %v1438
    %1857 = vmatprep.subr.mxu0 0.0
    %1858 = vmatpush1.msra.mxu0 %v1437
    %1859 = vmatprep.subr.mxu0 0.0
    %1860 = vmatpush1.msra.mxu0 %v1436
    %1861 = vmatprep.subr.mxu0 0.0
    %1862 = vmatpush1.msra.mxu0 %v1435
    %1863 = vmatprep.subr.mxu0 0.0
    %1864 = vmatpush1.msra.mxu0 %v1434
    %1865 = vmatprep.subr.mxu0 0.0
    %1866 = vmatpush1.msra.mxu0 %v1433
    %1867 = vmatprep.subr.mxu0 0.0
    %1868 = vmatpush2.msra.mxu0 %v1464
    %1869 = vmatprep.subr.mxu0 0.0
    %1870 = vmatpush2.msra.mxu0 %v1463
    %1871 = vmatprep.subr.mxu0 0.0
    %1872 = vmatpush2.msra.mxu0 %v1462
    %1873 = vmatprep.subr.mxu0 0.0
    %1874 = vmatpush2.msra.mxu0 %v1461
    %1875 = vmatprep.subr.mxu0 0.0
    %1876 = vmatpush2.msra.mxu0 %v1460
    %1877 = vmatprep.subr.mxu0 0.0
    %1878 = vmatpush2.msra.mxu0 %v1459
    %1879 = vmatprep.subr.mxu0 0.0
    %1880 = vmatpush2.msra.mxu0 %v1458
    %1881 = vmatprep.subr.mxu0 0.0
    %1882 = vmatpush2.msra.mxu0 %v1457
    %1883 = vmatprep.subr.mxu0 0.0
    %1884 = vmatpush2.msra.mxu0 %v1456
    %1885 = vmatprep.subr.mxu0 0.0
    %1886 = vmatpush2.msra.mxu0 %v1455
    %1887 = vmatprep.subr.mxu0 0.0
    %1888 = vmatpush2.msra.mxu0 %v1454
    %1889 = vmatprep.subr.mxu0 0.0
    %1890 = vmatpush2.msra.mxu0 %v1453
    %1891 = vmatprep.subr.mxu0 0.0
    %1892 = vmatpush2.msra.mxu0 %v1452
    %1893 = vmatprep.subr.mxu0 0.0
    %1894 = vmatpush2.msra.mxu0 %v1451
    %1895 = vmatprep.subr.mxu0 0.0
    %1896 = vmatpush2.msra.mxu0 %v1450
    %1897 = vmatprep.subr.mxu0 0.0
    %1898 = vmatpush2.msra.mxu0 %v1449
    %1899 = vmatprep.mubr.f32.mxu0 %v1267
    %1900 = vmatmul.mubr.f32.gmra.mxu0 %v1264
    %v1901 = vpop.f32.mrf.mxu0
    %v1902 = vadd.f32 %v1827, %v1901
    %v1903 = vpop.f32.mrf.mxu0
    %1904 = vmatprep.mubr.f32.mxu0 %v1273
    %1905 = vmatmul.mubr.f32.gmra.mxu0 %v1270
    %v1906 = vpop.f32.mrf.mxu0
    %v1907 = vadd.f32 %v1832, %v1906
    %v1908 = vpop.f32.mrf.mxu0
    %1909 = vdwg.mxu0
    %1910 = vmatprep.subr.mxu0 0.0
    %1911 = vmatpush1.msra.mxu0 %v1480
    %1912 = vmatprep.subr.mxu0 0.0
    %1913 = vmatpush1.msra.mxu0 %v1479
    %1914 = vmatprep.subr.mxu0 0.0
    %1915 = vmatpush1.msra.mxu0 %v1478
    %1916 = vmatprep.subr.mxu0 0.0
    %1917 = vmatpush1.msra.mxu0 %v1477
    %1918 = vmatprep.subr.mxu0 0.0
    %1919 = vmatpush1.msra.mxu0 %v1476
    %1920 = vmatprep.subr.mxu0 0.0
    %1921 = vmatpush1.msra.mxu0 %v1475
    %1922 = vmatprep.subr.mxu0 0.0
    %1923 = vmatpush1.msra.mxu0 %v1474
    %1924 = vmatprep.subr.mxu0 0.0
    %1925 = vmatpush1.msra.mxu0 %v1473
    %1926 = vmatprep.subr.mxu0 0.0
    %1927 = vmatpush1.msra.mxu0 %v1472
    %1928 = vmatprep.subr.mxu0 0.0
    %1929 = vmatpush1.msra.mxu0 %v1471
    %1930 = vmatprep.subr.mxu0 0.0
    %1931 = vmatpush1.msra.mxu0 %v1470
    %1932 = vmatprep.subr.mxu0 0.0
    %1933 = vmatpush1.msra.mxu0 %v1469
    %1934 = vmatprep.subr.mxu0 0.0
    %1935 = vmatpush1.msra.mxu0 %v1468
    %1936 = vmatprep.subr.mxu0 0.0
    %1937 = vmatpush1.msra.mxu0 %v1467
    %1938 = vmatprep.subr.mxu0 0.0
    %1939 = vmatpush1.msra.mxu0 %v1466
    %1940 = vmatprep.subr.mxu0 0.0
    %1941 = vmatpush1.msra.mxu0 %v1465
    %1942 = vmatprep.subr.mxu0 0.0
    %1943 = vmatpush2.msra.mxu0 %v1496
    %1944 = vmatprep.subr.mxu0 0.0
    %1945 = vmatpush2.msra.mxu0 %v1495
    %1946 = vmatprep.subr.mxu0 0.0
    %1947 = vmatpush2.msra.mxu0 %v1494
    %1948 = vmatprep.subr.mxu0 0.0
    %1949 = vmatpush2.msra.mxu0 %v1493
    %1950 = vmatprep.subr.mxu0 0.0
    %1951 = vmatpush2.msra.mxu0 %v1492
    %1952 = vmatprep.subr.mxu0 0.0
    %1953 = vmatpush2.msra.mxu0 %v1491
    %1954 = vmatprep.subr.mxu0 0.0
    %1955 = vmatpush2.msra.mxu0 %v1490
    %1956 = vmatprep.subr.mxu0 0.0
    %1957 = vmatpush2.msra.mxu0 %v1489
    %1958 = vmatprep.subr.mxu0 0.0
    %1959 = vmatpush2.msra.mxu0 %v1488
    %1960 = vmatprep.subr.mxu0 0.0
    %1961 = vmatpush2.msra.mxu0 %v1487
    %1962 = vmatprep.subr.mxu0 0.0
    %1963 = vmatpush2.msra.mxu0 %v1486
    %1964 = vmatprep.subr.mxu0 0.0
    %1965 = vmatpush2.msra.mxu0 %v1485
    %1966 = vmatprep.subr.mxu0 0.0
    %1967 = vmatpush2.msra.mxu0 %v1484
    %1968 = vmatprep.subr.mxu0 0.0
    %1969 = vmatpush2.msra.mxu0 %v1483
    %1970 = vmatprep.subr.mxu0 0.0
    %1971 = vmatpush2.msra.mxu0 %v1482
    %1972 = vmatprep.subr.mxu0 0.0
    %1973 = vmatpush2.msra.mxu0 %v1481
    %1974 = vmatprep.mubr.f32.mxu0 %v1284
    %1975 = vmatmul.mubr.f32.gmra.mxu0 %v1281
    %v1976 = vpop.f32.mrf.mxu0
    %v1977 = vadd.f32 %v1902, %v1976
    %v1978 = vpop.f32.mrf.mxu0
    %1979 = vmatprep.mubr.f32.mxu0 %v1290
    %1980 = vmatmul.mubr.f32.gmra.mxu0 %v1287
    %v1981 = vpop.f32.mrf.mxu0
    %v1982 = vadd.f32 %v1907, %v1981
    %v1983 = vpop.f32.mrf.mxu0
    %1984 = vdwg.mxu0
    %1985 = vmatprep.subr.mxu0 0.0
    %1986 = vmatpush1.msra.mxu0 %v1512
    %1987 = vmatprep.subr.mxu0 0.0
    %1988 = vmatpush1.msra.mxu0 %v1511
    %1989 = vmatprep.subr.mxu0 0.0
    %1990 = vmatpush1.msra.mxu0 %v1510
    %1991 = vmatprep.subr.mxu0 0.0
    %1992 = vmatpush1.msra.mxu0 %v1509
    %1993 = vmatprep.subr.mxu0 0.0
    %1994 = vmatpush1.msra.mxu0 %v1508
    %1995 = vmatprep.subr.mxu0 0.0
    %1996 = vmatpush1.msra.mxu0 %v1507
    %1997 = vmatprep.subr.mxu0 0.0
    %1998 = vmatpush1.msra.mxu0 %v1506
    %1999 = vmatprep.subr.mxu0 0.0
    %2000 = vmatpush1.msra.mxu0 %v1505
    %2001 = vmatprep.subr.mxu0 0.0
    %2002 = vmatpush1.msra.mxu0 %v1504
    %2003 = vmatprep.subr.mxu0 0.0
    %2004 = vmatpush1.msra.mxu0 %v1503
    %2005 = vmatprep.subr.mxu0 0.0
    %2006 = vmatpush1.msra.mxu0 %v1502
    %2007 = vmatprep.subr.mxu0 0.0
    %2008 = vmatpush1.msra.mxu0 %v1501
    %2009 = vmatprep.subr.mxu0 0.0
    %2010 = vmatpush1.msra.mxu0 %v1500
    %2011 = vmatprep.subr.mxu0 0.0
    %2012 = vmatpush1.msra.mxu0 %v1499
    %2013 = vmatprep.subr.mxu0 0.0
    %2014 = vmatpush1.msra.mxu0 %v1498
    %2015 = vmatprep.subr.mxu0 0.0
    %2016 = vmatpush1.msra.mxu0 %v1497
    %2017 = vmatprep.subr.mxu0 0.0
    %2018 = vmatpush2.msra.mxu0 %v1528
    %2019 = vmatprep.subr.mxu0 0.0
    %2020 = vmatpush2.msra.mxu0 %v1527
    %2021 = vmatprep.subr.mxu0 0.0
    %2022 = vmatpush2.msra.mxu0 %v1526
    %2023 = vmatprep.subr.mxu0 0.0
    %2024 = vmatpush2.msra.mxu0 %v1525
    %2025 = vmatprep.subr.mxu0 0.0
    %2026 = vmatpush2.msra.mxu0 %v1524
    %2027 = vmatprep.subr.mxu0 0.0
    %2028 = vmatpush2.msra.mxu0 %v1523
    %2029 = vmatprep.subr.mxu0 0.0
    %2030 = vmatpush2.msra.mxu0 %v1522
    %2031 = vmatprep.subr.mxu0 0.0
    %2032 = vmatpush2.msra.mxu0 %v1521
    %2033 = vmatprep.subr.mxu0 0.0
    %2034 = vmatpush2.msra.mxu0 %v1520
    %2035 = vmatprep.subr.mxu0 0.0
    %2036 = vmatpush2.msra.mxu0 %v1519
    %2037 = vmatprep.subr.mxu0 0.0
    %2038 = vmatpush2.msra.mxu0 %v1518
    %2039 = vmatprep.subr.mxu0 0.0
    %2040 = vmatpush2.msra.mxu0 %v1517
    %2041 = vmatprep.subr.mxu0 0.0
    %2042 = vmatpush2.msra.mxu0 %v1516
    %2043 = vmatprep.subr.mxu0 0.0
    %2044 = vmatpush2.msra.mxu0 %v1515
    %2045 = vmatprep.subr.mxu0 0.0
    %2046 = vmatpush2.msra.mxu0 %v1514
    %2047 = vmatprep.subr.mxu0 0.0
    %2048 = vmatpush2.msra.mxu0 %v1513
    %2049 = vmatprep.mubr.f32.mxu0 %v1301
    %2050 = vmatmul.mubr.f32.gmra.mxu0 %v1298
    %v2051 = vpop.f32.mrf.mxu0
    %v2052 = vadd.f32 %v1977, %v2051
    %v2053 = vpop.f32.mrf.mxu0
    %2054 = vmatprep.mubr.f32.mxu0 %v1307
    %2055 = vmatmul.mubr.f32.gmra.mxu0 %v1304
    %v2056 = vpop.f32.mrf.mxu0
    %v2057 = vadd.f32 %v1982, %v2056
    %v2058 = vpop.f32.mrf.mxu0
    %2059 = vdwg.mxu0
    %2060 = vmatprep.subr.mxu0 0.0
    %2061 = vmatpush1.msra.mxu0 %v1544
    %2062 = vmatprep.subr.mxu0 0.0
    %2063 = vmatpush1.msra.mxu0 %v1543
    %2064 = vmatprep.subr.mxu0 0.0
    %2065 = vmatpush1.msra.mxu0 %v1542
    %2066 = vmatprep.subr.mxu0 0.0
    %2067 = vmatpush1.msra.mxu0 %v1541
    %2068 = vmatprep.subr.mxu0 0.0
    %2069 = vmatpush1.msra.mxu0 %v1540
    %2070 = vmatprep.subr.mxu0 0.0
    %2071 = vmatpush1.msra.mxu0 %v1539
    %2072 = vmatprep.subr.mxu0 0.0
    %2073 = vmatpush1.msra.mxu0 %v1538
    %2074 = vmatprep.subr.mxu0 0.0
    %2075 = vmatpush1.msra.mxu0 %v1537
    %2076 = vmatprep.subr.mxu0 0.0
    %2077 = vmatpush1.msra.mxu0 %v1536
    %2078 = vmatprep.subr.mxu0 0.0
    %2079 = vmatpush1.msra.mxu0 %v1535
    %2080 = vmatprep.subr.mxu0 0.0
    %2081 = vmatpush1.msra.mxu0 %v1534
    %2082 = vmatprep.subr.mxu0 0.0
    %2083 = vmatpush1.msra.mxu0 %v1533
    %2084 = vmatprep.subr.mxu0 0.0
    %2085 = vmatpush1.msra.mxu0 %v1532
    %2086 = vmatprep.subr.mxu0 0.0
    %2087 = vmatpush1.msra.mxu0 %v1531
    %2088 = vmatprep.subr.mxu0 0.0
    %2089 = vmatpush1.msra.mxu0 %v1530
    %2090 = vmatprep.subr.mxu0 0.0
    %2091 = vmatpush1.msra.mxu0 %v1529
    %2092 = vmatprep.subr.mxu0 0.0
    %2093 = vmatpush2.msra.mxu0 %v1560
    %2094 = vmatprep.subr.mxu0 0.0
    %2095 = vmatpush2.msra.mxu0 %v1559
    %2096 = vmatprep.subr.mxu0 0.0
    %2097 = vmatpush2.msra.mxu0 %v1558
    %2098 = vmatprep.subr.mxu0 0.0
    %2099 = vmatpush2.msra.mxu0 %v1557
    %2100 = vmatprep.subr.mxu0 0.0
    %2101 = vmatpush2.msra.mxu0 %v1556
    %2102 = vmatprep.subr.mxu0 0.0
    %2103 = vmatpush2.msra.mxu0 %v1555
    %2104 = vmatprep.subr.mxu0 0.0
    %2105 = vmatpush2.msra.mxu0 %v1554
    %2106 = vmatprep.subr.mxu0 0.0
    %2107 = vmatpush2.msra.mxu0 %v1553
    %2108 = vmatprep.subr.mxu0 0.0
    %2109 = vmatpush2.msra.mxu0 %v1552
    %2110 = vmatprep.subr.mxu0 0.0
    %2111 = vmatpush2.msra.mxu0 %v1551
    %2112 = vmatprep.subr.mxu0 0.0
    %2113 = vmatpush2.msra.mxu0 %v1550
    %2114 = vmatprep.subr.mxu0 0.0
    %2115 = vmatpush2.msra.mxu0 %v1549
    %2116 = vmatprep.subr.mxu0 0.0
    %2117 = vmatpush2.msra.mxu0 %v1548
    %2118 = vmatprep.subr.mxu0 0.0
    %2119 = vmatpush2.msra.mxu0 %v1547
    %2120 = vmatprep.subr.mxu0 0.0
    %2121 = vmatpush2.msra.mxu0 %v1546
    %2122 = vmatprep.subr.mxu0 0.0
    %2123 = vmatpush2.msra.mxu0 %v1545
    %2124 = vmatprep.mubr.f32.mxu0 %v1318
    %2125 = vmatmul.mubr.f32.gmra.mxu0 %v1315
    %v2126 = vpop.f32.mrf.mxu0
    %v2127 = vadd.f32 %v2052, %v2126
    %v2128 = vpop.f32.mrf.mxu0
    %2129 = vmatprep.mubr.f32.mxu0 %v1324
    %2130 = vmatmul.mubr.f32.gmra.mxu0 %v1321
    %v2131 = vpop.f32.mrf.mxu0
    %v2132 = vadd.f32 %v2057, %v2131
    %v2133 = vpop.f32.mrf.mxu0
    %2134 = vdwg.mxu0
    %2135 = vmatprep.subr.mxu0 0.0
    %2136 = vmatpush1.msra.mxu0 %v1576
    %2137 = vmatprep.subr.mxu0 0.0
    %2138 = vmatpush1.msra.mxu0 %v1575
    %2139 = vmatprep.subr.mxu0 0.0
    %2140 = vmatpush1.msra.mxu0 %v1574
    %2141 = vmatprep.subr.mxu0 0.0
    %2142 = vmatpush1.msra.mxu0 %v1573
    %2143 = vmatprep.subr.mxu0 0.0
    %2144 = vmatpush1.msra.mxu0 %v1572
    %2145 = vmatprep.subr.mxu0 0.0
    %2146 = vmatpush1.msra.mxu0 %v1571
    %2147 = vmatprep.subr.mxu0 0.0
    %2148 = vmatpush1.msra.mxu0 %v1570
    %2149 = vmatprep.subr.mxu0 0.0
    %2150 = vmatpush1.msra.mxu0 %v1569
    %2151 = vmatprep.subr.mxu0 0.0
    %2152 = vmatpush1.msra.mxu0 %v1568
    %2153 = vmatprep.subr.mxu0 0.0
    %2154 = vmatpush1.msra.mxu0 %v1567
    %2155 = vmatprep.subr.mxu0 0.0
    %2156 = vmatpush1.msra.mxu0 %v1566
    %2157 = vmatprep.subr.mxu0 0.0
    %2158 = vmatpush1.msra.mxu0 %v1565
    %2159 = vmatprep.subr.mxu0 0.0
    %2160 = vmatpush1.msra.mxu0 %v1564
    %2161 = vmatprep.subr.mxu0 0.0
    %2162 = vmatpush1.msra.mxu0 %v1563
    %2163 = vmatprep.subr.mxu0 0.0
    %2164 = vmatpush1.msra.mxu0 %v1562
    %2165 = vmatprep.subr.mxu0 0.0
    %2166 = vmatpush1.msra.mxu0 %v1561
    %2167 = vmatprep.subr.mxu0 0.0
    %2168 = vmatpush2.msra.mxu0 %v1592
    %2169 = vmatprep.subr.mxu0 0.0
    %2170 = vmatpush2.msra.mxu0 %v1591
    %2171 = vmatprep.subr.mxu0 0.0
    %2172 = vmatpush2.msra.mxu0 %v1590
    %2173 = vmatprep.subr.mxu0 0.0
    %2174 = vmatpush2.msra.mxu0 %v1589
    %2175 = vmatprep.subr.mxu0 0.0
    %2176 = vmatpush2.msra.mxu0 %v1588
    %2177 = vmatprep.subr.mxu0 0.0
    %2178 = vmatpush2.msra.mxu0 %v1587
    %2179 = vmatprep.subr.mxu0 0.0
    %2180 = vmatpush2.msra.mxu0 %v1586
    %2181 = vmatprep.subr.mxu0 0.0
    %2182 = vmatpush2.msra.mxu0 %v1585
    %2183 = vmatprep.subr.mxu0 0.0
    %2184 = vmatpush2.msra.mxu0 %v1584
    %2185 = vmatprep.subr.mxu0 0.0
    %2186 = vmatpush2.msra.mxu0 %v1583
    %2187 = vmatprep.subr.mxu0 0.0
    %2188 = vmatpush2.msra.mxu0 %v1582
    %2189 = vmatprep.subr.mxu0 0.0
    %2190 = vmatpush2.msra.mxu0 %v1581
    %2191 = vmatprep.subr.mxu0 0.0
    %2192 = vmatpush2.msra.mxu0 %v1580
    %2193 = vmatprep.subr.mxu0 0.0
    %2194 = vmatpush2.msra.mxu0 %v1579
    %2195 = vmatprep.subr.mxu0 0.0
    %2196 = vmatpush2.msra.mxu0 %v1578
    %2197 = vmatprep.subr.mxu0 0.0
    %2198 = vmatpush2.msra.mxu0 %v1577
    %2199 = vmatprep.mubr.f32.mxu0 %v1334
    %2200 = vmatmul.mubr.f32.gmra.mxu0 %v1331
    %v2201 = vpop.f32.mrf.mxu0
    %v2202 = vadd.f32 %v2127, %v2201
    %v2203 = vpop.f32.mrf.mxu0
    %2204 = vmatprep.mubr.f32.mxu0 %v1340
    %2205 = vmatmul.mubr.f32.gmra.mxu0 %v1337
    %v2206 = vpop.f32.mrf.mxu0
    %v2207 = vadd.f32 %v2132, %v2206
    %v2208 = vpop.f32.mrf.mxu0
    %2209 = vdwg.mxu0
    %2210 = vmatprep.subr.mxu0 0.0
    %2211 = vmatpush1.msra.mxu0 %v1608
    %2212 = vmatprep.subr.mxu0 0.0
    %2213 = vmatpush1.msra.mxu0 %v1607
    %2214 = vmatprep.subr.mxu0 0.0
    %2215 = vmatpush1.msra.mxu0 %v1606
    %2216 = vmatprep.subr.mxu0 0.0
    %2217 = vmatpush1.msra.mxu0 %v1605
    %2218 = vmatprep.subr.mxu0 0.0
    %2219 = vmatpush1.msra.mxu0 %v1604
    %2220 = vmatprep.subr.mxu0 0.0
    %2221 = vmatpush1.msra.mxu0 %v1603
    %2222 = vmatprep.subr.mxu0 0.0
    %2223 = vmatpush1.msra.mxu0 %v1602
    %2224 = vmatprep.subr.mxu0 0.0
    %2225 = vmatpush1.msra.mxu0 %v1601
    %2226 = vmatprep.subr.mxu0 0.0
    %2227 = vmatpush1.msra.mxu0 %v1600
    %2228 = vmatprep.subr.mxu0 0.0
    %2229 = vmatpush1.msra.mxu0 %v1599
    %2230 = vmatprep.subr.mxu0 0.0
    %2231 = vmatpush1.msra.mxu0 %v1598
    %2232 = vmatprep.subr.mxu0 0.0
    %2233 = vmatpush1.msra.mxu0 %v1597
    %2234 = vmatprep.subr.mxu0 0.0
    %2235 = vmatpush1.msra.mxu0 %v1596
    %2236 = vmatprep.subr.mxu0 0.0
    %2237 = vmatpush1.msra.mxu0 %v1595
    %2238 = vmatprep.subr.mxu0 0.0
    %2239 = vmatpush1.msra.mxu0 %v1594
    %2240 = vmatprep.subr.mxu0 0.0
    %2241 = vmatpush1.msra.mxu0 %v1593
    %2242 = vmatprep.subr.mxu0 0.0
    %2243 = vmatpush2.msra.mxu0 %v1624
    %2244 = vmatprep.subr.mxu0 0.0
    %2245 = vmatpush2.msra.mxu0 %v1623
    %2246 = vmatprep.subr.mxu0 0.0
    %2247 = vmatpush2.msra.mxu0 %v1622
    %2248 = vmatprep.subr.mxu0 0.0
    %2249 = vmatpush2.msra.mxu0 %v1621
    %2250 = vmatprep.subr.mxu0 0.0
    %2251 = vmatpush2.msra.mxu0 %v1620
    %2252 = vmatprep.subr.mxu0 0.0
    %2253 = vmatpush2.msra.mxu0 %v1619
    %2254 = vmatprep.subr.mxu0 0.0
    %2255 = vmatpush2.msra.mxu0 %v1618
    %2256 = vmatprep.subr.mxu0 0.0
    %2257 = vmatpush2.msra.mxu0 %v1617
    %2258 = vmatprep.subr.mxu0 0.0
    %2259 = vmatpush2.msra.mxu0 %v1616
    %2260 = vmatprep.subr.mxu0 0.0
    %2261 = vmatpush2.msra.mxu0 %v1615
    %2262 = vmatprep.subr.mxu0 0.0
    %2263 = vmatpush2.msra.mxu0 %v1614
    %2264 = vmatprep.subr.mxu0 0.0
    %2265 = vmatpush2.msra.mxu0 %v1613
    %2266 = vmatprep.subr.mxu0 0.0
    %2267 = vmatpush2.msra.mxu0 %v1612
    %2268 = vmatprep.subr.mxu0 0.0
    %2269 = vmatpush2.msra.mxu0 %v1611
    %2270 = vmatprep.subr.mxu0 0.0
    %2271 = vmatpush2.msra.mxu0 %v1610
    %2272 = vmatprep.subr.mxu0 0.0
    %2273 = vmatpush2.msra.mxu0 %v1609
    %2274 = vmatprep.mubr.f32.mxu0 %v1351
    %2275 = vmatmul.mubr.f32.gmra.mxu0 %v1348
    %v2276 = vpop.f32.mrf.mxu0
    %v2277 = vadd.f32 %v2202, %v2276
    %v2278 = vpop.f32.mrf.mxu0
    %2279 = vmatprep.mubr.f32.mxu0 %v1357
    %2280 = vmatmul.mubr.f32.gmra.mxu0 %v1354
    %v2281 = vpop.f32.mrf.mxu0
    %v2282 = vadd.f32 %v2207, %v2281
    %v2283 = vpop.f32.mrf.mxu0
    %2284 = vdwg.mxu0
    %2285 = vmatprep.subr.mxu0 0.0
    %2286 = vmatpush1.msra.mxu0 %v1640
    %2287 = vmatprep.subr.mxu0 0.0
    %2288 = vmatpush1.msra.mxu0 %v1639
    %2289 = vmatprep.subr.mxu0 0.0
    %2290 = vmatpush1.msra.mxu0 %v1638
    %2291 = vmatprep.subr.mxu0 0.0
    %2292 = vmatpush1.msra.mxu0 %v1637
    %2293 = vmatprep.subr.mxu0 0.0
    %2294 = vmatpush1.msra.mxu0 %v1636
    %2295 = vmatprep.subr.mxu0 0.0
    %2296 = vmatpush1.msra.mxu0 %v1635
    %2297 = vmatprep.subr.mxu0 0.0
    %2298 = vmatpush1.msra.mxu0 %v1634
    %2299 = vmatprep.subr.mxu0 0.0
    %2300 = vmatpush1.msra.mxu0 %v1633
    %2301 = vmatprep.subr.mxu0 0.0
    %2302 = vmatpush1.msra.mxu0 %v1632
    %2303 = vmatprep.subr.mxu0 0.0
    %2304 = vmatpush1.msra.mxu0 %v1631
    %2305 = vmatprep.subr.mxu0 0.0
    %2306 = vmatpush1.msra.mxu0 %v1630
    %2307 = vmatprep.subr.mxu0 0.0
    %2308 = vmatpush1.msra.mxu0 %v1629
    %2309 = vmatprep.subr.mxu0 0.0
    %2310 = vmatpush1.msra.mxu0 %v1628
    %2311 = vmatprep.subr.mxu0 0.0
    %2312 = vmatpush1.msra.mxu0 %v1627
    %2313 = vmatprep.subr.mxu0 0.0
    %2314 = vmatpush1.msra.mxu0 %v1626
    %2315 = vmatprep.subr.mxu0 0.0
    %2316 = vmatpush1.msra.mxu0 %v1625
    %2317 = vmatprep.subr.mxu0 0.0
    %2318 = vmatpush2.msra.mxu0 %v1656
    %2319 = vmatprep.subr.mxu0 0.0
    %2320 = vmatpush2.msra.mxu0 %v1655
    %2321 = vmatprep.subr.mxu0 0.0
    %2322 = vmatpush2.msra.mxu0 %v1654
    %2323 = vmatprep.subr.mxu0 0.0
    %2324 = vmatpush2.msra.mxu0 %v1653
    %2325 = vmatprep.subr.mxu0 0.0
    %2326 = vmatpush2.msra.mxu0 %v1652
    %2327 = vmatprep.subr.mxu0 0.0
    %2328 = vmatpush2.msra.mxu0 %v1651
    %2329 = vmatprep.subr.mxu0 0.0
    %2330 = vmatpush2.msra.mxu0 %v1650
    %2331 = vmatprep.subr.mxu0 0.0
    %2332 = vmatpush2.msra.mxu0 %v1649
    %2333 = vmatprep.subr.mxu0 0.0
    %2334 = vmatpush2.msra.mxu0 %v1648
    %2335 = vmatprep.subr.mxu0 0.0
    %2336 = vmatpush2.msra.mxu0 %v1647
    %2337 = vmatprep.subr.mxu0 0.0
    %2338 = vmatpush2.msra.mxu0 %v1646
    %2339 = vmatprep.subr.mxu0 0.0
    %2340 = vmatpush2.msra.mxu0 %v1645
    %2341 = vmatprep.subr.mxu0 0.0
    %2342 = vmatpush2.msra.mxu0 %v1644
    %2343 = vmatprep.subr.mxu0 0.0
    %2344 = vmatpush2.msra.mxu0 %v1643
    %2345 = vmatprep.subr.mxu0 0.0
    %2346 = vmatpush2.msra.mxu0 %v1642
    %2347 = vmatprep.subr.mxu0 0.0
    %2348 = vmatpush2.msra.mxu0 %v1641
    %2349 = vmatprep.mubr.f32.mxu0 %v1368
    %2350 = vmatmul.mubr.f32.gmra.mxu0 %v1365
    %v2351 = vpop.f32.mrf.mxu0
    %v2352 = vadd.f32 %v2277, %v2351
    %v2353 = vpop.f32.mrf.mxu0
    %2354 = vmatprep.mubr.f32.mxu0 %v1374
    %2355 = vmatmul.mubr.f32.gmra.mxu0 %v1371
    %v2356 = vpop.f32.mrf.mxu0
    %v2357 = vadd.f32 %v2282, %v2356
    %v2358 = vpop.f32.mrf.mxu0
    %2359 = vdwg.mxu0
    %2360 = vmatprep.subr.mxu0 0.0
    %2361 = vmatpush1.msra.mxu0 %v1672
    %2362 = vmatprep.subr.mxu0 0.0
    %2363 = vmatpush1.msra.mxu0 %v1671
    %2364 = vmatprep.subr.mxu0 0.0
    %2365 = vmatpush1.msra.mxu0 %v1670
    %2366 = vmatprep.subr.mxu0 0.0
    %2367 = vmatpush1.msra.mxu0 %v1669
    %2368 = vmatprep.subr.mxu0 0.0
    %2369 = vmatpush1.msra.mxu0 %v1668
    %2370 = vmatprep.subr.mxu0 0.0
    %2371 = vmatpush1.msra.mxu0 %v1667
    %2372 = vmatprep.subr.mxu0 0.0
    %2373 = vmatpush1.msra.mxu0 %v1666
    %2374 = vmatprep.subr.mxu0 0.0
    %2375 = vmatpush1.msra.mxu0 %v1665
    %2376 = vmatprep.subr.mxu0 0.0
    %2377 = vmatpush1.msra.mxu0 %v1664
    %2378 = vmatprep.subr.mxu0 0.0
    %2379 = vmatpush1.msra.mxu0 %v1663
    %2380 = vmatprep.subr.mxu0 0.0
    %2381 = vmatpush1.msra.mxu0 %v1662
    %2382 = vmatprep.subr.mxu0 0.0
    %2383 = vmatpush1.msra.mxu0 %v1661
    %2384 = vmatprep.subr.mxu0 0.0
    %2385 = vmatpush1.msra.mxu0 %v1660
    %2386 = vmatprep.subr.mxu0 0.0
    %2387 = vmatpush1.msra.mxu0 %v1659
    %2388 = vmatprep.subr.mxu0 0.0
    %2389 = vmatpush1.msra.mxu0 %v1658
    %2390 = vmatprep.subr.mxu0 0.0
    %2391 = vmatpush1.msra.mxu0 %v1657
    %2392 = vmatprep.subr.mxu0 0.0
    %2393 = vmatpush2.msra.mxu0 %v1688
    %2394 = vmatprep.subr.mxu0 0.0
    %2395 = vmatpush2.msra.mxu0 %v1687
    %2396 = vmatprep.subr.mxu0 0.0
    %2397 = vmatpush2.msra.mxu0 %v1686
    %2398 = vmatprep.subr.mxu0 0.0
    %2399 = vmatpush2.msra.mxu0 %v1685
    %2400 = vmatprep.subr.mxu0 0.0
    %2401 = vmatpush2.msra.mxu0 %v1684
    %2402 = vmatprep.subr.mxu0 0.0
    %2403 = vmatpush2.msra.mxu0 %v1683
    %2404 = vmatprep.subr.mxu0 0.0
    %2405 = vmatpush2.msra.mxu0 %v1682
    %2406 = vmatprep.subr.mxu0 0.0
    %2407 = vmatpush2.msra.mxu0 %v1681
    %2408 = vmatprep.subr.mxu0 0.0
    %2409 = vmatpush2.msra.mxu0 %v1680
    %2410 = vmatprep.subr.mxu0 0.0
    %2411 = vmatpush2.msra.mxu0 %v1679
    %2412 = vmatprep.subr.mxu0 0.0
    %2413 = vmatpush2.msra.mxu0 %v1678
    %2414 = vmatprep.subr.mxu0 0.0
    %2415 = vmatpush2.msra.mxu0 %v1677
    %2416 = vmatprep.subr.mxu0 0.0
    %2417 = vmatpush2.msra.mxu0 %v1676
    %2418 = vmatprep.subr.mxu0 0.0
    %2419 = vmatpush2.msra.mxu0 %v1675
    %2420 = vmatprep.subr.mxu0 0.0
    %2421 = vmatpush2.msra.mxu0 %v1674
    %2422 = vmatprep.subr.mxu0 0.0
    %2423 = vmatpush2.msra.mxu0 %v1673
    %2424 = vmatprep.mubr.f32.mxu0 %v1249
    %2425 = vmatmul.mubr.f32.gmra.mxu0 %v1234
    %v2426 = vpop.f32.mrf.mxu0
    %v2427 = vadd.f32 %v2352, %v2426
    %v2428 = vpop.f32.mrf.mxu0
    %2429 = vmatprep.mubr.f32.mxu0 %v1252
    %2430 = vmatmul.mubr.f32.gmra.mxu0 %v1237
    %v2431 = vpop.f32.mrf.mxu0
    %v2432 = vadd.f32 %v2357, %v2431
    %v2433 = vpop.f32.mrf.mxu0
    %2434 = vdwg.mxu0
    %2435 = vmatprep.subr.mxu0 0.0
    %2436 = vmatpush1.msra.mxu0 %v1704
    %2437 = vmatprep.subr.mxu0 0.0
    %2438 = vmatpush1.msra.mxu0 %v1703
    %2439 = vmatprep.subr.mxu0 0.0
    %2440 = vmatpush1.msra.mxu0 %v1702
    %2441 = vmatprep.subr.mxu0 0.0
    %2442 = vmatpush1.msra.mxu0 %v1701
    %2443 = vmatprep.subr.mxu0 0.0
    %2444 = vmatpush1.msra.mxu0 %v1700
    %2445 = vmatprep.subr.mxu0 0.0
    %2446 = vmatpush1.msra.mxu0 %v1699
    %2447 = vmatprep.subr.mxu0 0.0
    %2448 = vmatpush1.msra.mxu0 %v1698
    %2449 = vmatprep.subr.mxu0 0.0
    %2450 = vmatpush1.msra.mxu0 %v1697
    %2451 = vmatprep.subr.mxu0 0.0
    %2452 = vmatpush1.msra.mxu0 %v1696
    %2453 = vmatprep.subr.mxu0 0.0
    %2454 = vmatpush1.msra.mxu0 %v1695
    %2455 = vmatprep.subr.mxu0 0.0
    %2456 = vmatpush1.msra.mxu0 %v1694
    %2457 = vmatprep.subr.mxu0 0.0
    %2458 = vmatpush1.msra.mxu0 %v1693
    %2459 = vmatprep.subr.mxu0 0.0
    %2460 = vmatpush1.msra.mxu0 %v1692
    %2461 = vmatprep.subr.mxu0 0.0
    %2462 = vmatpush1.msra.mxu0 %v1691
    %2463 = vmatprep.subr.mxu0 0.0
    %2464 = vmatpush1.msra.mxu0 %v1690
    %2465 = vmatprep.subr.mxu0 0.0
    %2466 = vmatpush1.msra.mxu0 %v1689
    %2467 = vmatprep.subr.mxu0 0.0
    %2468 = vmatpush2.msra.mxu0 %v1720
    %2469 = vmatprep.subr.mxu0 0.0
    %2470 = vmatpush2.msra.mxu0 %v1719
    %2471 = vmatprep.subr.mxu0 0.0
    %2472 = vmatpush2.msra.mxu0 %v1718
    %2473 = vmatprep.subr.mxu0 0.0
    %2474 = vmatpush2.msra.mxu0 %v1717
    %2475 = vmatprep.subr.mxu0 0.0
    %2476 = vmatpush2.msra.mxu0 %v1716
    %2477 = vmatprep.subr.mxu0 0.0
    %2478 = vmatpush2.msra.mxu0 %v1715
    %2479 = vmatprep.subr.mxu0 0.0
    %2480 = vmatpush2.msra.mxu0 %v1714
    %2481 = vmatprep.subr.mxu0 0.0
    %2482 = vmatpush2.msra.mxu0 %v1713
    %2483 = vmatprep.subr.mxu0 0.0
    %2484 = vmatpush2.msra.mxu0 %v1712
    %2485 = vmatprep.subr.mxu0 0.0
    %2486 = vmatpush2.msra.mxu0 %v1711
    %2487 = vmatprep.subr.mxu0 0.0
    %2488 = vmatpush2.msra.mxu0 %v1710
    %2489 = vmatprep.subr.mxu0 0.0
    %2490 = vmatpush2.msra.mxu0 %v1709
    %2491 = vmatprep.subr.mxu0 0.0
    %2492 = vmatpush2.msra.mxu0 %v1708
    %2493 = vmatprep.subr.mxu0 0.0
    %2494 = vmatpush2.msra.mxu0 %v1707
    %2495 = vmatprep.subr.mxu0 0.0
    %2496 = vmatpush2.msra.mxu0 %v1706
    %2497 = vmatprep.subr.mxu0 0.0
    %2498 = vmatpush2.msra.mxu0 %v1705
    %2499 = vmatprep.mubr.f32.mxu0 %v1384
    %2500 = vmatmul.mubr.f32.gmra.mxu0 %v1382
    %v2501 = vpop.f32.mrf.mxu0
    %v2502 = vadd.f32 %v2427, %v2501
    %v2503 = vpop.f32.mrf.mxu0
    %2504 = vmatprep.mubr.f32.mxu0 %v1386
    %2505 = vmatmul.mubr.f32.gmra.mxu0 %v1385
    %v2506 = vpop.f32.mrf.mxu0
    %v2507 = vadd.f32 %v2432, %v2506
    %v2508 = vpop.f32.mrf.mxu0
    %2509 = vdwg.mxu0
    %2510 = vmatprep.subr.mxu0 0.0
    %2511 = vmatpush1.msra.mxu0 %v1736
    %2512 = vmatprep.subr.mxu0 0.0
    %2513 = vmatpush1.msra.mxu0 %v1735
    %2514 = vmatprep.subr.mxu0 0.0
    %2515 = vmatpush1.msra.mxu0 %v1734
    %2516 = vmatprep.subr.mxu0 0.0
    %2517 = vmatpush1.msra.mxu0 %v1733
    %2518 = vmatprep.subr.mxu0 0.0
    %2519 = vmatpush1.msra.mxu0 %v1732
    %2520 = vmatprep.subr.mxu0 0.0
    %2521 = vmatpush1.msra.mxu0 %v1731
    %2522 = vmatprep.subr.mxu0 0.0
    %2523 = vmatpush1.msra.mxu0 %v1730
    %2524 = vmatprep.subr.mxu0 0.0
    %2525 = vmatpush1.msra.mxu0 %v1729
    %2526 = vmatprep.subr.mxu0 0.0
    %2527 = vmatpush1.msra.mxu0 %v1728
    %2528 = vmatprep.subr.mxu0 0.0
    %2529 = vmatpush1.msra.mxu0 %v1727
    %2530 = vmatprep.subr.mxu0 0.0
    %2531 = vmatpush1.msra.mxu0 %v1726
    %2532 = vmatprep.subr.mxu0 0.0
    %2533 = vmatpush1.msra.mxu0 %v1725
    %2534 = vmatprep.subr.mxu0 0.0
    %2535 = vmatpush1.msra.mxu0 %v1724
    %2536 = vmatprep.subr.mxu0 0.0
    %2537 = vmatpush1.msra.mxu0 %v1723
    %2538 = vmatprep.subr.mxu0 0.0
    %2539 = vmatpush1.msra.mxu0 %v1722
    %2540 = vmatprep.subr.mxu0 0.0
    %2541 = vmatpush1.msra.mxu0 %v1721
    %2542 = vmatprep.subr.mxu0 0.0
    %2543 = vmatpush2.msra.mxu0 %v1752
    %2544 = vmatprep.subr.mxu0 0.0
    %2545 = vmatpush2.msra.mxu0 %v1751
    %2546 = vmatprep.subr.mxu0 0.0
    %2547 = vmatpush2.msra.mxu0 %v1750
    %2548 = vmatprep.subr.mxu0 0.0
    %2549 = vmatpush2.msra.mxu0 %v1749
    %2550 = vmatprep.subr.mxu0 0.0
    %2551 = vmatpush2.msra.mxu0 %v1748
    %2552 = vmatprep.subr.mxu0 0.0
    %2553 = vmatpush2.msra.mxu0 %v1747
    %2554 = vmatprep.subr.mxu0 0.0
    %2555 = vmatpush2.msra.mxu0 %v1746
    %2556 = vmatprep.subr.mxu0 0.0
    %2557 = vmatpush2.msra.mxu0 %v1745
    %2558 = vmatprep.subr.mxu0 0.0
    %2559 = vmatpush2.msra.mxu0 %v1744
    %2560 = vmatprep.subr.mxu0 0.0
    %2561 = vmatpush2.msra.mxu0 %v1743
    %2562 = vmatprep.subr.mxu0 0.0
    %2563 = vmatpush2.msra.mxu0 %v1742
    %2564 = vmatprep.subr.mxu0 0.0
    %2565 = vmatpush2.msra.mxu0 %v1741
    %2566 = vmatprep.subr.mxu0 0.0
    %2567 = vmatpush2.msra.mxu0 %v1740
    %2568 = vmatprep.subr.mxu0 0.0
    %2569 = vmatpush2.msra.mxu0 %v1739
    %2570 = vmatprep.subr.mxu0 0.0
    %2571 = vmatpush2.msra.mxu0 %v1738
    %2572 = vmatprep.subr.mxu0 0.0
    %2573 = vmatpush2.msra.mxu0 %v1737
    %2574 = vmatprep.mubr.f32.mxu0 %v1394
    %2575 = vmatmul.mubr.f32.gmra.mxu0 %v1392
    %v2576 = vpop.f32.mrf.mxu0
    %v2577 = vadd.f32 %v2502, %v2576
    %v2578 = vpop.f32.mrf.mxu0
    %2579 = vmatprep.mubr.f32.mxu0 %v1396
    %2580 = vmatmul.mubr.f32.gmra.mxu0 %v1395
    %v2581 = vpop.f32.mrf.mxu0
    %v2582 = vadd.f32 %v2507, %v2581
    %v2583 = vpop.f32.mrf.mxu0
    %2584 = vdwg.mxu0
    %v2585 = vmax.f32 %v2577, 0.0
    %v2586 = vmax.f32 %v2582, 0.0
    %v2587 = vmin.f32 %v2585, 20.0
    %v2588 = vmin.f32 %v2586, 20.0
    %v2589 = vld [vmem:[%s6] sm:$0xff]
    %v2590 = vld [vmem:[%s6 + $0x8] sm:$0xff]
    %2592 = vset.pattern.permute.xlu0 0
    %2593 = vperm.xlu0 %2592, %v2589
    %v2594 = vpop.permute.xlu0 %2593
    %2597 = vset.pattern.permute.xlu0 0
    %2598 = vperm.xlu0 %2597, %v2590
    %v2599 = vpop.permute.xlu0 %2598
    %v2601 = vmul.f32 %v2587, %v2594
    %v2602 = vmul.f32 %v2588, %v2599
    %2603 = vst [vmem:[#allocation2] sm:$0xff] %v2601
    %2604 = vst [vmem:[#allocation2 + $0x8] sm:$0xff] %v2602
    // Predicated region
    $region30: #{deepspeech2_extractor_forward.1} parent=1 // pred_check
      _
    $region31: #{deepspeech2_extractor_forward.1} parent=1 // pred_check_branch
      %2606 = sbr.rel (0) target = $region33
    $region32: #{deepspeech2_extractor_forward.1} parent=1 // pred_region
      %s2608 = ssub.s32 256, 256
      %2609 = vsyncadd [#allocation3], %s2608
      %s2610 = sshll.u32 [#allocation2], 4
      %s2611 = int_to_ptr.vmem [resolvable:$true] %s2610
      %2616 = dma.vmem_to_hbm [thread:$0]  %s2611, 256, %s7, [#allocation3], 128, 128, 8
    $region33: #{deepspeech2_extractor_forward.1} parent=1 // pred_fallthru
      _
    // Predicated region
    $region34: #{deepspeech2_extractor_forward.1} parent=1 // pred_check
      _
    $region35: #{deepspeech2_extractor_forward.1} parent=1 // pred_check_branch
      %2618 = sbr.rel (0) target = $region37
    $region36: #{deepspeech2_extractor_forward.1} parent=1 // pred_region
      %2619 = dma.done [#allocation3], 256
    $region37: #{deepspeech2_extractor_forward.1} parent=1 // pred_fallthru
      _
    %2620 = vsyncpa [#allocation3], 1

</llo_original>
